<compile_context>
chip_gen: v7x
topology: tpu7x:2x2x1
jax: 0.10.0
libtpu: 0.0.40
codegen_flags: <defaults>
</compile_context>

<pallas_src>
import math
import functools

import jax
import jax.numpy as jnp
from jax import lax
from jax.experimental import pallas as pl
from jax.experimental.pallas import tpu as pltpu


def _self_attention_kernel(
    x_ref,      # (S, Din)  bf16  one batch element's input rows
    wfc_ref,    # (Din, H)  bf16  fc weight (pre-transposed for x @ W)
    bfc_ref,    # (1, H)    f32
    wq_ref,     # (H, H)    bf16  in-proj query weight (pre-scaled by 1/sqrt(hd))
    wk_ref,     # (H, H)    bf16
    wv_ref,     # (H, H)    bf16
    bq_ref,     # (1, H)    f32   (pre-scaled)
    bk_ref,     # (1, H)    f32
    bv_ref,     # (1, H)    f32
    wo_ref,     # (H, H)    bf16  attn out-proj weight
    bo_ref,     # (1, H)    f32
    wout_ref,   # (H, H)    bf16  fc_out weight
    bout_ref,   # (1, H)    f32
    o_ref,      # (S, H)    f32   one batch element's output rows
    *,
    num_heads: int,
):
    f32 = jnp.float32
    bf16 = jnp.bfloat16

    x = x_ref[...]                      # (S, Din) bf16
    seq = x.shape[0]
    hidden = wq_ref.shape[1]
    hd = hidden // num_heads

    # q = fc(x)
    q_in = jnp.dot(x, wfc_ref[...], preferred_element_type=f32) + bfc_ref[...]
    q_in_bf = q_in.astype(bf16)

    # MultiheadAttention in-projections (query = key = value = q_in).
    # 1/sqrt(head_dim) is already folded into wq/bq.
    Q = jnp.dot(q_in_bf, wq_ref[...], preferred_element_type=f32) + bq_ref[...]
    K = jnp.dot(q_in_bf, wk_ref[...], preferred_element_type=f32) + bk_ref[...]
    V = jnp.dot(q_in_bf, wv_ref[...], preferred_element_type=f32) + bv_ref[...]

    # bf16 matmul operands, cast once (hoisted out of the head loop).
    Qb = Q.astype(bf16)
    Kb = K.astype(bf16)
    Vb = V.astype(bf16)
    wo = wo_ref[...]                    # (H, H) bf16, loaded once

    # Per-head attention with true head_dim contractions; the out-projection is
    # fused per head so the multi-head output is never materialized/concatenated.
    # NOTE: small static unrolled loop (num_heads=8 here); for large num_heads
    # move heads onto a grid axis or a fori_loop.
    acc = jnp.zeros((seq, hidden), f32)
    for h in range(num_heads):
        lo = h * hd
        qh = Qb[:, lo:lo + hd]          # (S, hd)
        kh = Kb[:, lo:lo + hd]          # (S, hd)
        vh = Vb[:, lo:lo + hd]          # (S, hd)
        # (S, hd) x (S, hd) contracting on hd -> (S, S); no K transpose materialized
        s = lax.dot_general(qh, kh, (((1,), (1,)), ((), ())),
                            preferred_element_type=f32)
        s = s - jnp.max(s, axis=-1, keepdims=True)
        p = jnp.exp(s)                  # f32 softmax (EUP exp, VPU elementwise)
        p = p * pl.reciprocal(jnp.sum(p, axis=-1, keepdims=True), approx=True)
        # TODO(synk): attention-weight dropout (p=0.1) omitted -- eval-mode semantics.
        oh = jnp.dot(p.astype(bf16), vh, preferred_element_type=f32)   # (S, hd)
        # Fused out-projection contribution of this head.
        acc = acc + jnp.dot(oh.astype(bf16), wo[lo:lo + hd, :],
                            preferred_element_type=f32)
    o = acc + bo_ref[...]

    # fc_out
    y = jnp.dot(o.astype(bf16), wout_ref[...], preferred_element_type=f32) + bout_ref[...]
    # TODO(synk): output dropout (p=0.1) omitted -- eval-mode semantics (identity).

    o_ref[...] = y.astype(o_ref.dtype)


def self_attention_pallas(x, params, *, num_heads):
    """x: (B, S, Din) float32 -> (B, S, H) float32."""
    B, S, Din = x.shape
    H = params["w_fc"].shape[1]
    hd = H // num_heads
    scale = 1.0 / math.sqrt(hd)
    bf16 = jnp.bfloat16
    f32 = jnp.float32

    x_bf = x.astype(bf16)

    # Fold the softmax scale into the query projection.
    w_q = (params["w_q"] * scale).astype(bf16)
    b_q = (params["b_q"] * scale).astype(f32)

    w_fc = params["w_fc"].astype(bf16)
    w_k = params["w_k"].astype(bf16)
    w_v = params["w_v"].astype(bf16)
    w_o = params["w_o"].astype(bf16)
    w_out = params["w_out"].astype(bf16)

    # Weights/biases: full blocks, constant index_map -> stay resident in VMEM.
    def resident(shape):
        return pl.BlockSpec(shape, lambda b: (0, 0))

    kernel = functools.partial(_self_attention_kernel, num_heads=num_heads)

    out = pl.pallas_call(
        kernel,
        out_shape=jax.ShapeDtypeStruct((B, S, H), f32),
        grid_spec=pltpu.PrefetchScalarGridSpec(
            num_scalar_prefetch=0,
            grid=(B,),                                 # one batch element per step
            in_specs=[
                pl.BlockSpec((None, S, Din), lambda b: (b, 0, 0)),   # x[b]
                resident((Din, H)),   # w_fc
                resident((1, H)),     # b_fc
                resident((H, H)),     # w_q (pre-scaled)
                resident((H, H)),     # w_k
                resident((H, H)),     # w_v
                resident((1, H)),     # b_q (pre-scaled)
                resident((1, H)),     # b_k
                resident((1, H)),     # b_v
                resident((H, H)),     # w_o
                resident((1, H)),     # b_o
                resident((H, H)),     # w_out
                resident((1, H)),     # b_out
            ],
            out_specs=pl.BlockSpec((None, S, H), lambda b: (b, 0, 0)),
        ),
        compiler_params=pltpu.CompilerParams(
            # Batch axis is independent -> megacore shards it across TCs (v7x).
            dimension_semantics=("parallel",),
            # <= ~48 MiB so the budget also respects v7x's 64 MiB VMEM.
            vmem_limit_bytes=48 * 1024 * 1024,
        ),
    )(
        x_bf,
        w_fc, params["b_fc"],
        w_q, w_k, w_v,
        b_q, params["b_k"], params["b_v"],
        w_o, params["b_o"],
        w_out, params["b_out"],
    )
    return out


def self_attention_reference(x, params, *, num_heads):
    """Plain-JAX float32 reference (same math as the PyTorch module, batched)."""
    q_in = jnp.einsum("bsd,dh->bsh", x, params["w_fc"]) + params["b_fc"]
    Q = jnp.einsum("bsh,hk->bsk", q_in, params["w_q"]) + params["b_q"]
    K = jnp.einsum("bsh,hk->bsk", q_in, params["w_k"]) + params["b_k"]
    V = jnp.einsum("bsh,hk->bsk", q_in, params["w_v"]) + params["b_v"]
    B, S, H = Q.shape
    hd = H // num_heads
    Qh = Q.reshape(B, S, num_heads, hd)
    Kh = K.reshape(B, S, num_heads, hd)
    Vh = V.reshape(B, S, num_heads, hd)
    s = jnp.einsum("bqnd,bknd->bnqk", Qh, Kh) / math.sqrt(hd)
    p = jax.nn.softmax(s, axis=-1)
    o = jnp.einsum("bnqk,bknd->bqnd", p, Vh).reshape(B, S, H)
    o = jnp.einsum("bsh,hk->bsk", o, params["w_o"]) + params["b_o"]
    y = jnp.einsum("bsh,hk->bsk", o, params["w_out"]) + params["b_out"]
    return y


def init_params(key, input_dim, hidden_dim):
    """Deterministic synthetic parameter init (PyTorch layer shapes, stored
    pre-transposed for `x @ W`)."""
    ks = jax.random.split(key, 8)
    s_fc = 1.0 / math.sqrt(input_dim)
    s_h = 1.0 / math.sqrt(hidden_dim)
    return {
        "w_fc":  jax.random.uniform(ks[0], (input_dim, hidden_dim), jnp.float32, -s_fc, s_fc),
        "b_fc":  jax.random.uniform(ks[1], (1, hidden_dim), jnp.float32, -s_fc, s_fc),
        "w_q":   jax.random.uniform(ks[2], (hidden_dim, hidden_dim), jnp.float32, -s_h, s_h),
        "w_k":   jax.random.uniform(ks[3], (hidden_dim, hidden_dim), jnp.float32, -s_h, s_h),
        "w_v":   jax.random.uniform(ks[4], (hidden_dim, hidden_dim), jnp.float32, -s_h, s_h),
        "b_q":   jnp.zeros((1, hidden_dim), jnp.float32),
        "b_k":   jnp.zeros((1, hidden_dim), jnp.float32),
        "b_v":   jnp.zeros((1, hidden_dim), jnp.float32),
        "w_o":   jax.random.uniform(ks[5], (hidden_dim, hidden_dim), jnp.float32, -s_h, s_h),
        "b_o":   jnp.zeros((1, hidden_dim), jnp.float32),
        "w_out": jax.random.uniform(ks[6], (hidden_dim, hidden_dim), jnp.float32, -s_h, s_h),
        "b_out": jax.random.uniform(ks[7], (1, hidden_dim), jnp.float32, -s_h, s_h),
    }


if __name__ == "__main__":
    B, S, INPUT_DIM, HIDDEN_DIM, NUM_HEADS = 2, 8, 16, 32, 8

    key = jax.random.PRNGKey(0)
    k_x, k_p = jax.random.split(key)
    x = jax.random.normal(k_x, (B, S, INPUT_DIM), jnp.float32)
    params = init_params(k_p, INPUT_DIM, HIDDEN_DIM)

    out = self_attention_pallas(x, params, num_heads=NUM_HEADS)
    out = jax.block_until_ready(out)

    ref = self_attention_reference(x, params, num_heads=NUM_HEADS)
    assert out.shape == (B, S, HIDDEN_DIM)
    max_err = float(jnp.max(jnp.abs(out - ref)))
    # bf16 matmul operands (f32 accumulation) + approx softmax reciprocal
    # -> looser tolerance than pure f32.
    assert jnp.allclose(out, ref, atol=5e-2, rtol=5e-2), \
        f"Pallas kernel mismatch vs reference (max abs err {max_err})"

    print("KERNEL_OK")
</pallas_src>

<mosaic_0001>
module attributes {stable_mosaic.version = 11 : i64} {
  func.func @_self_attention_kernel(%arg0: i32, %arg1: memref<1x8x16xbf16, #tpu.memory_space<vmem>>, %arg2: memref<16x32xbf16, #tpu.memory_space<vmem>>, %arg3: memref<1x32xf32, #tpu.memory_space<vmem>>, %arg4: memref<32x32xbf16, #tpu.memory_space<vmem>>, %arg5: memref<32x32xbf16, #tpu.memory_space<vmem>>, %arg6: memref<32x32xbf16, #tpu.memory_space<vmem>>, %arg7: memref<1x32xf32, #tpu.memory_space<vmem>>, %arg8: memref<1x32xf32, #tpu.memory_space<vmem>>, %arg9: memref<1x32xf32, #tpu.memory_space<vmem>>, %arg10: memref<32x32xbf16, #tpu.memory_space<vmem>>, %arg11: memref<1x32xf32, #tpu.memory_space<vmem>>, %arg12: memref<32x32xbf16, #tpu.memory_space<vmem>>, %arg13: memref<1x32xf32, #tpu.memory_space<vmem>>, %arg14: memref<1x8x32xf32, #tpu.memory_space<vmem>>) attributes {dimension_semantics = [#tpu.dimension_semantics<parallel>], iteration_bounds = array<i64: 2>, scalar_prefetch = 0 : i64, scratch_operands = 0 : i64, tpu.core_type = #tpu.core_type<tc>, window_params = [{transform_indices = @transform_0, window_bounds = array<i64: 1, 8, 16>}, {pipeline_mode = #tpu.pipeline_mode<synchronous>, transform_indices = @transform_1, window_bounds = array<i64: 16, 32>}, {pipeline_mode = #tpu.pipeline_mode<synchronous>, transform_indices = @transform_2, window_bounds = array<i64: 1, 32>}, {pipeline_mode = #tpu.pipeline_mode<synchronous>, transform_indices = @transform_3, window_bounds = array<i64: 32, 32>}, {pipeline_mode = #tpu.pipeline_mode<synchronous>, transform_indices = @transform_4, window_bounds = array<i64: 32, 32>}, {pipeline_mode = #tpu.pipeline_mode<synchronous>, transform_indices = @transform_5, window_bounds = array<i64: 32, 32>}, {pipeline_mode = #tpu.pipeline_mode<synchronous>, transform_indices = @transform_6, window_bounds = array<i64: 1, 32>}, {pipeline_mode = #tpu.pipeline_mode<synchronous>, transform_indices = @transform_7, window_bounds = array<i64: 1, 32>}, {pipeline_mode = #tpu.pipeline_mode<synchronous>, transform_indices = @transform_8, window_bounds = array<i64: 1, 32>}, {pipeline_mode = #tpu.pipeline_mode<synchronous>, transform_indices = @transform_9, window_bounds = array<i64: 32, 32>}, {pipeline_mode = #tpu.pipeline_mode<synchronous>, transform_indices = @transform_10, window_bounds = array<i64: 1, 32>}, {pipeline_mode = #tpu.pipeline_mode<synchronous>, transform_indices = @transform_11, window_bounds = array<i64: 32, 32>}, {pipeline_mode = #tpu.pipeline_mode<synchronous>, transform_indices = @transform_12, window_bounds = array<i64: 1, 32>}, {transform_indices = @transform_13, window_bounds = array<i64: 1, 8, 32>}]} {
    %c0 = arith.constant 0 : index
    %c0_0 = arith.constant 0 : index
    %c0_1 = arith.constant 0 : index
    %0 = vector.load %arg1[%c0, %c0_0, %c0_1] : memref<1x8x16xbf16, #tpu.memory_space<vmem>>, vector<1x8x16xbf16>
    %1 = vector.shape_cast %0 : vector<1x8x16xbf16> to vector<8x16xbf16>
    %c0_2 = arith.constant 0 : index
    %c0_3 = arith.constant 0 : index
    %2 = vector.load %arg2[%c0_2, %c0_3] : memref<16x32xbf16, #tpu.memory_space<vmem>>, vector<16x32xbf16>
    %cst = arith.constant dense<0.000000e+00> : vector<8x32xf32>
    %3 = tpu.matmul %1, %2, %cst {dimension_numbers = #tpu.dot_dimension_numbers<[1], [0], [0], [1], [0, 0, 1, 1], [], []>} : vector<8x16xbf16>, vector<16x32xbf16>, vector<8x32xf32> -> vector<8x32xf32>
    %c0_4 = arith.constant 0 : index
    %c0_5 = arith.constant 0 : index
    %4 = vector.load %arg3[%c0_4, %c0_5] : memref<1x32xf32, #tpu.memory_space<vmem>>, vector<1x32xf32>
    %5 = vector.broadcast %4 : vector<1x32xf32> to vector<8x32xf32>
    %6 = arith.addf %3, %5 : vector<8x32xf32>
    %7 = arith.truncf %6 : vector<8x32xf32> to vector<8x32xbf16>
    %c0_6 = arith.constant 0 : index
    %c0_7 = arith.constant 0 : index
    %8 = vector.load %arg4[%c0_6, %c0_7] : memref<32x32xbf16, #tpu.memory_space<vmem>>, vector<32x32xbf16>
    %cst_8 = arith.constant dense<0.000000e+00> : vector<8x32xf32>
    %9 = tpu.matmul %7, %8, %cst_8 {dimension_numbers = #tpu.dot_dimension_numbers<[1], [0], [0], [1], [0, 0, 1, 1], [], []>} : vector<8x32xbf16>, vector<32x32xbf16>, vector<8x32xf32> -> vector<8x32xf32>
    %c0_9 = arith.constant 0 : index
    %c0_10 = arith.constant 0 : index
    %10 = vector.load %arg7[%c0_9, %c0_10] : memref<1x32xf32, #tpu.memory_space<vmem>>, vector<1x32xf32>
    %11 = vector.broadcast %10 : vector<1x32xf32> to vector<8x32xf32>
    %12 = arith.addf %9, %11 : vector<8x32xf32>
    %c0_11 = arith.constant 0 : index
    %c0_12 = arith.constant 0 : index
    %13 = vector.load %arg5[%c0_11, %c0_12] : memref<32x32xbf16, #tpu.memory_space<vmem>>, vector<32x32xbf16>
    %cst_13 = arith.constant dense<0.000000e+00> : vector<8x32xf32>
    %14 = tpu.matmul %7, %13, %cst_13 {dimension_numbers = #tpu.dot_dimension_numbers<[1], [0], [0], [1], [0, 0, 1, 1], [], []>} : vector<8x32xbf16>, vector<32x32xbf16>, vector<8x32xf32> -> vector<8x32xf32>
    %c0_14 = arith.constant 0 : index
    %c0_15 = arith.constant 0 : index
    %15 = vector.load %arg8[%c0_14, %c0_15] : memref<1x32xf32, #tpu.memory_space<vmem>>, vector<1x32xf32>
    %16 = vector.broadcast %15 : vector<1x32xf32> to vector<8x32xf32>
    %17 = arith.addf %14, %16 : vector<8x32xf32>
    %c0_16 = arith.constant 0 : index
    %c0_17 = arith.constant 0 : index
    %18 = vector.load %arg6[%c0_16, %c0_17] : memref<32x32xbf16, #tpu.memory_space<vmem>>, vector<32x32xbf16>
    %cst_18 = arith.constant dense<0.000000e+00> : vector<8x32xf32>
    %19 = tpu.matmul %7, %18, %cst_18 {dimension_numbers = #tpu.dot_dimension_numbers<[1], [0], [0], [1], [0, 0, 1, 1], [], []>} : vector<8x32xbf16>, vector<32x32xbf16>, vector<8x32xf32> -> vector<8x32xf32>
    %c0_19 = arith.constant 0 : index
    %c0_20 = arith.constant 0 : index
    %20 = vector.load %arg9[%c0_19, %c0_20] : memref<1x32xf32, #tpu.memory_space<vmem>>, vector<1x32xf32>
    %21 = vector.broadcast %20 : vector<1x32xf32> to vector<8x32xf32>
    %22 = arith.addf %19, %21 : vector<8x32xf32>
    %23 = arith.truncf %12 : vector<8x32xf32> to vector<8x32xbf16>
    %24 = arith.truncf %17 : vector<8x32xf32> to vector<8x32xbf16>
    %25 = arith.truncf %22 : vector<8x32xf32> to vector<8x32xbf16>
    %c0_21 = arith.constant 0 : index
    %c0_22 = arith.constant 0 : index
    %26 = vector.load %arg10[%c0_21, %c0_22] : memref<32x32xbf16, #tpu.memory_space<vmem>>, vector<32x32xbf16>
    %cst_23 = arith.constant 0.000000e+00 : f32
    %27 = vector.broadcast %cst_23 : f32 to vector<8x32xf32>
    %28 = vector.extract_strided_slice %23 {offsets = [0, 0], sizes = [8, 4], strides = [1, 1]} : vector<8x32xbf16> to vector<8x4xbf16>
    %29 = vector.extract_strided_slice %24 {offsets = [0, 0], sizes = [8, 4], strides = [1, 1]} : vector<8x32xbf16> to vector<8x4xbf16>
    %30 = vector.extract_strided_slice %25 {offsets = [0, 0], sizes = [8, 4], strides = [1, 1]} : vector<8x32xbf16> to vector<8x4xbf16>
    %cst_24 = arith.constant dense<0.000000e+00> : vector<8x8xf32>
    %31 = tpu.matmul %28, %29, %cst_24 {dimension_numbers = #tpu.dot_dimension_numbers<[1], [1], [0], [0], [0, 0, 1, 0], [], []>} : vector<8x4xbf16>, vector<8x4xbf16>, vector<8x8xf32> -> vector<8x8xf32>
    %cst_25 = arith.constant dense<0xFF800000> : vector<8xf32>
    %32 = vector.multi_reduction <maximumf>, %31, %cst_25 [1] : vector<8x8xf32> to vector<8xf32>
    %33 = vector.shape_cast %32 : vector<8xf32> to vector<8x1xf32>
    %34 = vector.broadcast %33 : vector<8x1xf32> to vector<8x8xf32>
    %35 = arith.subf %31, %34 : vector<8x8xf32>
    %36 = math.exp %35 : vector<8x8xf32>
    %cst_26 = arith.constant dense<0.000000e+00> : vector<8xf32>
    %37 = vector.multi_reduction <add>, %36, %cst_26 [1] : vector<8x8xf32> to vector<8xf32>
    %38 = vector.shape_cast %37 : vector<8xf32> to vector<8x1xf32>
    %39 = tpu.reciprocal %38 {approx = true} : vector<8x1xf32> -> vector<8x1xf32>
    %40 = vector.broadcast %39 : vector<8x1xf32> to vector<8x8xf32>
    %41 = arith.mulf %36, %40 : vector<8x8xf32>
    %42 = arith.truncf %41 : vector<8x8xf32> to vector<8x8xbf16>
    %cst_27 = arith.constant dense<0.000000e+00> : vector<8x4xf32>
    %43 = tpu.matmul %42, %30, %cst_27 {dimension_numbers = #tpu.dot_dimension_numbers<[1], [0], [0], [1], [0, 0, 1, 1], [], []>} : vector<8x8xbf16>, vector<8x4xbf16>, vector<8x4xf32> -> vector<8x4xf32>
    %44 = arith.truncf %43 : vector<8x4xf32> to vector<8x4xbf16>
    %45 = vector.extract_strided_slice %26 {offsets = [0, 0], sizes = [4, 32], strides = [1, 1]} : vector<32x32xbf16> to vector<4x32xbf16>
    %cst_28 = arith.constant dense<0.000000e+00> : vector<8x32xf32>
    %46 = tpu.matmul %44, %45, %cst_28 {dimension_numbers = #tpu.dot_dimension_numbers<[1], [0], [0], [1], [0, 0, 1, 1], [], []>} : vector<8x4xbf16>, vector<4x32xbf16>, vector<8x32xf32> -> vector<8x32xf32>
    %47 = arith.addf %27, %46 : vector<8x32xf32>
    %48 = vector.extract_strided_slice %23 {offsets = [0, 4], sizes = [8, 4], strides = [1, 1]} : vector<8x32xbf16> to vector<8x4xbf16>
    %49 = vector.extract_strided_slice %24 {offsets = [0, 4], sizes = [8, 4], strides = [1, 1]} : vector<8x32xbf16> to vector<8x4xbf16>
    %50 = vector.extract_strided_slice %25 {offsets = [0, 4], sizes = [8, 4], strides = [1, 1]} : vector<8x32xbf16> to vector<8x4xbf16>
    %cst_29 = arith.constant dense<0.000000e+00> : vector<8x8xf32>
    %51 = tpu.matmul %48, %49, %cst_29 {dimension_numbers = #tpu.dot_dimension_numbers<[1], [1], [0], [0], [0, 0, 1, 0], [], []>} : vector<8x4xbf16>, vector<8x4xbf16>, vector<8x8xf32> -> vector<8x8xf32>
    %cst_30 = arith.constant dense<0xFF800000> : vector<8xf32>
    %52 = vector.multi_reduction <maximumf>, %51, %cst_30 [1] : vector<8x8xf32> to vector<8xf32>
    %53 = vector.shape_cast %52 : vector<8xf32> to vector<8x1xf32>
    %54 = vector.broadcast %53 : vector<8x1xf32> to vector<8x8xf32>
    %55 = arith.subf %51, %54 : vector<8x8xf32>
    %56 = math.exp %55 : vector<8x8xf32>
    %cst_31 = arith.constant dense<0.000000e+00> : vector<8xf32>
    %57 = vector.multi_reduction <add>, %56, %cst_31 [1] : vector<8x8xf32> to vector<8xf32>
    %58 = vector.shape_cast %57 : vector<8xf32> to vector<8x1xf32>
    %59 = tpu.reciprocal %58 {approx = true} : vector<8x1xf32> -> vector<8x1xf32>
    %60 = vector.broadcast %59 : vector<8x1xf32> to vector<8x8xf32>
    %61 = arith.mulf %56, %60 : vector<8x8xf32>
    %62 = arith.truncf %61 : vector<8x8xf32> to vector<8x8xbf16>
    %cst_32 = arith.constant dense<0.000000e+00> : vector<8x4xf32>
    %63 = tpu.matmul %62, %50, %cst_32 {dimension_numbers = #tpu.dot_dimension_numbers<[1], [0], [0], [1], [0, 0, 1, 1], [], []>} : vector<8x8xbf16>, vector<8x4xbf16>, vector<8x4xf32> -> vector<8x4xf32>
    %64 = arith.truncf %63 : vector<8x4xf32> to vector<8x4xbf16>
    %65 = vector.extract_strided_slice %26 {offsets = [4, 0], sizes = [4, 32], strides = [1, 1]} : vector<32x32xbf16> to vector<4x32xbf16>
    %cst_33 = arith.constant dense<0.000000e+00> : vector<8x32xf32>
    %66 = tpu.matmul %64, %65, %cst_33 {dimension_numbers = #tpu.dot_dimension_numbers<[1], [0], [0], [1], [0, 0, 1, 1], [], []>} : vector<8x4xbf16>, vector<4x32xbf16>, vector<8x32xf32> -> vector<8x32xf32>
    %67 = arith.addf %47, %66 : vector<8x32xf32>
    %68 = vector.extract_strided_slice %23 {offsets = [0, 8], sizes = [8, 4], strides = [1, 1]} : vector<8x32xbf16> to vector<8x4xbf16>
    %69 = vector.extract_strided_slice %24 {offsets = [0, 8], sizes = [8, 4], strides = [1, 1]} : vector<8x32xbf16> to vector<8x4xbf16>
    %70 = vector.extract_strided_slice %25 {offsets = [0, 8], sizes = [8, 4], strides = [1, 1]} : vector<8x32xbf16> to vector<8x4xbf16>
    %cst_34 = arith.constant dense<0.000000e+00> : vector<8x8xf32>
    %71 = tpu.matmul %68, %69, %cst_34 {dimension_numbers = #tpu.dot_dimension_numbers<[1], [1], [0], [0], [0, 0, 1, 0], [], []>} : vector<8x4xbf16>, vector<8x4xbf16>, vector<8x8xf32> -> vector<8x8xf32>
    %cst_35 = arith.constant dense<0xFF800000> : vector<8xf32>
    %72 = vector.multi_reduction <maximumf>, %71, %cst_35 [1] : vector<8x8xf32> to vector<8xf32>
    %73 = vector.shape_cast %72 : vector<8xf32> to vector<8x1xf32>
    %74 = vector.broadcast %73 : vector<8x1xf32> to vector<8x8xf32>
    %75 = arith.subf %71, %74 : vector<8x8xf32>
    %76 = math.exp %75 : vector<8x8xf32>
    %cst_36 = arith.constant dense<0.000000e+00> : vector<8xf32>
    %77 = vector.multi_reduction <add>, %76, %cst_36 [1] : vector<8x8xf32> to vector<8xf32>
    %78 = vector.shape_cast %77 : vector<8xf32> to vector<8x1xf32>
    %79 = tpu.reciprocal %78 {approx = true} : vector<8x1xf32> -> vector<8x1xf32>
    %80 = vector.broadcast %79 : vector<8x1xf32> to vector<8x8xf32>
    %81 = arith.mulf %76, %80 : vector<8x8xf32>
    %82 = arith.truncf %81 : vector<8x8xf32> to vector<8x8xbf16>
    %cst_37 = arith.constant dense<0.000000e+00> : vector<8x4xf32>
    %83 = tpu.matmul %82, %70, %cst_37 {dimension_numbers = #tpu.dot_dimension_numbers<[1], [0], [0], [1], [0, 0, 1, 1], [], []>} : vector<8x8xbf16>, vector<8x4xbf16>, vector<8x4xf32> -> vector<8x4xf32>
    %84 = arith.truncf %83 : vector<8x4xf32> to vector<8x4xbf16>
    %85 = vector.extract_strided_slice %26 {offsets = [8, 0], sizes = [4, 32], strides = [1, 1]} : vector<32x32xbf16> to vector<4x32xbf16>
    %cst_38 = arith.constant dense<0.000000e+00> : vector<8x32xf32>
    %86 = tpu.matmul %84, %85, %cst_38 {dimension_numbers = #tpu.dot_dimension_numbers<[1], [0], [0], [1], [0, 0, 1, 1], [], []>} : vector<8x4xbf16>, vector<4x32xbf16>, vector<8x32xf32> -> vector<8x32xf32>
    %87 = arith.addf %67, %86 : vector<8x32xf32>
    %88 = vector.extract_strided_slice %23 {offsets = [0, 12], sizes = [8, 4], strides = [1, 1]} : vector<8x32xbf16> to vector<8x4xbf16>
    %89 = vector.extract_strided_slice %24 {offsets = [0, 12], sizes = [8, 4], strides = [1, 1]} : vector<8x32xbf16> to vector<8x4xbf16>
    %90 = vector.extract_strided_slice %25 {offsets = [0, 12], sizes = [8, 4], strides = [1, 1]} : vector<8x32xbf16> to vector<8x4xbf16>
    %cst_39 = arith.constant dense<0.000000e+00> : vector<8x8xf32>
    %91 = tpu.matmul %88, %89, %cst_39 {dimension_numbers = #tpu.dot_dimension_numbers<[1], [1], [0], [0], [0, 0, 1, 0], [], []>} : vector<8x4xbf16>, vector<8x4xbf16>, vector<8x8xf32> -> vector<8x8xf32>
    %cst_40 = arith.constant dense<0xFF800000> : vector<8xf32>
    %92 = vector.multi_reduction <maximumf>, %91, %cst_40 [1] : vector<8x8xf32> to vector<8xf32>
    %93 = vector.shape_cast %92 : vector<8xf32> to vector<8x1xf32>
    %94 = vector.broadcast %93 : vector<8x1xf32> to vector<8x8xf32>
    %95 = arith.subf %91, %94 : vector<8x8xf32>
    %96 = math.exp %95 : vector<8x8xf32>
    %cst_41 = arith.constant dense<0.000000e+00> : vector<8xf32>
    %97 = vector.multi_reduction <add>, %96, %cst_41 [1] : vector<8x8xf32> to vector<8xf32>
    %98 = vector.shape_cast %97 : vector<8xf32> to vector<8x1xf32>
    %99 = tpu.reciprocal %98 {approx = true} : vector<8x1xf32> -> vector<8x1xf32>
    %100 = vector.broadcast %99 : vector<8x1xf32> to vector<8x8xf32>
    %101 = arith.mulf %96, %100 : vector<8x8xf32>
    %102 = arith.truncf %101 : vector<8x8xf32> to vector<8x8xbf16>
    %cst_42 = arith.constant dense<0.000000e+00> : vector<8x4xf32>
    %103 = tpu.matmul %102, %90, %cst_42 {dimension_numbers = #tpu.dot_dimension_numbers<[1], [0], [0], [1], [0, 0, 1, 1], [], []>} : vector<8x8xbf16>, vector<8x4xbf16>, vector<8x4xf32> -> vector<8x4xf32>
    %104 = arith.truncf %103 : vector<8x4xf32> to vector<8x4xbf16>
    %105 = vector.extract_strided_slice %26 {offsets = [12, 0], sizes = [4, 32], strides = [1, 1]} : vector<32x32xbf16> to vector<4x32xbf16>
    %cst_43 = arith.constant dense<0.000000e+00> : vector<8x32xf32>
    %106 = tpu.matmul %104, %105, %cst_43 {dimension_numbers = #tpu.dot_dimension_numbers<[1], [0], [0], [1], [0, 0, 1, 1], [], []>} : vector<8x4xbf16>, vector<4x32xbf16>, vector<8x32xf32> -> vector<8x32xf32>
    %107 = arith.addf %87, %106 : vector<8x32xf32>
    %108 = vector.extract_strided_slice %23 {offsets = [0, 16], sizes = [8, 4], strides = [1, 1]} : vector<8x32xbf16> to vector<8x4xbf16>
    %109 = vector.extract_strided_slice %24 {offsets = [0, 16], sizes = [8, 4], strides = [1, 1]} : vector<8x32xbf16> to vector<8x4xbf16>
    %110 = vector.extract_strided_slice %25 {offsets = [0, 16], sizes = [8, 4], strides = [1, 1]} : vector<8x32xbf16> to vector<8x4xbf16>
    %cst_44 = arith.constant dense<0.000000e+00> : vector<8x8xf32>
    %111 = tpu.matmul %108, %109, %cst_44 {dimension_numbers = #tpu.dot_dimension_numbers<[1], [1], [0], [0], [0, 0, 1, 0], [], []>} : vector<8x4xbf16>, vector<8x4xbf16>, vector<8x8xf32> -> vector<8x8xf32>
    %cst_45 = arith.constant dense<0xFF800000> : vector<8xf32>
    %112 = vector.multi_reduction <maximumf>, %111, %cst_45 [1] : vector<8x8xf32> to vector<8xf32>
    %113 = vector.shape_cast %112 : vector<8xf32> to vector<8x1xf32>
    %114 = vector.broadcast %113 : vector<8x1xf32> to vector<8x8xf32>
    %115 = arith.subf %111, %114 : vector<8x8xf32>
    %116 = math.exp %115 : vector<8x8xf32>
    %cst_46 = arith.constant dense<0.000000e+00> : vector<8xf32>
    %117 = vector.multi_reduction <add>, %116, %cst_46 [1] : vector<8x8xf32> to vector<8xf32>
    %118 = vector.shape_cast %117 : vector<8xf32> to vector<8x1xf32>
    %119 = tpu.reciprocal %118 {approx = true} : vector<8x1xf32> -> vector<8x1xf32>
    %120 = vector.broadcast %119 : vector<8x1xf32> to vector<8x8xf32>
    %121 = arith.mulf %116, %120 : vector<8x8xf32>
    %122 = arith.truncf %121 : vector<8x8xf32> to vector<8x8xbf16>
    %cst_47 = arith.constant dense<0.000000e+00> : vector<8x4xf32>
    %123 = tpu.matmul %122, %110, %cst_47 {dimension_numbers = #tpu.dot_dimension_numbers<[1], [0], [0], [1], [0, 0, 1, 1], [], []>} : vector<8x8xbf16>, vector<8x4xbf16>, vector<8x4xf32> -> vector<8x4xf32>
    %124 = arith.truncf %123 : vector<8x4xf32> to vector<8x4xbf16>
    %125 = vector.extract_strided_slice %26 {offsets = [16, 0], sizes = [4, 32], strides = [1, 1]} : vector<32x32xbf16> to vector<4x32xbf16>
    %cst_48 = arith.constant dense<0.000000e+00> : vector<8x32xf32>
    %126 = tpu.matmul %124, %125, %cst_48 {dimension_numbers = #tpu.dot_dimension_numbers<[1], [0], [0], [1], [0, 0, 1, 1], [], []>} : vector<8x4xbf16>, vector<4x32xbf16>, vector<8x32xf32> -> vector<8x32xf32>
    %127 = arith.addf %107, %126 : vector<8x32xf32>
    %128 = vector.extract_strided_slice %23 {offsets = [0, 20], sizes = [8, 4], strides = [1, 1]} : vector<8x32xbf16> to vector<8x4xbf16>
    %129 = vector.extract_strided_slice %24 {offsets = [0, 20], sizes = [8, 4], strides = [1, 1]} : vector<8x32xbf16> to vector<8x4xbf16>
    %130 = vector.extract_strided_slice %25 {offsets = [0, 20], sizes = [8, 4], strides = [1, 1]} : vector<8x32xbf16> to vector<8x4xbf16>
    %cst_49 = arith.constant dense<0.000000e+00> : vector<8x8xf32>
    %131 = tpu.matmul %128, %129, %cst_49 {dimension_numbers = #tpu.dot_dimension_numbers<[1], [1], [0], [0], [0, 0, 1, 0], [], []>} : vector<8x4xbf16>, vector<8x4xbf16>, vector<8x8xf32> -> vector<8x8xf32>
    %cst_50 = arith.constant dense<0xFF800000> : vector<8xf32>
    %132 = vector.multi_reduction <maximumf>, %131, %cst_50 [1] : vector<8x8xf32> to vector<8xf32>
    %133 = vector.shape_cast %132 : vector<8xf32> to vector<8x1xf32>
    %134 = vector.broadcast %133 : vector<8x1xf32> to vector<8x8xf32>
    %135 = arith.subf %131, %134 : vector<8x8xf32>
    %136 = math.exp %135 : vector<8x8xf32>
    %cst_51 = arith.constant dense<0.000000e+00> : vector<8xf32>
    %137 = vector.multi_reduction <add>, %136, %cst_51 [1] : vector<8x8xf32> to vector<8xf32>
    %138 = vector.shape_cast %137 : vector<8xf32> to vector<8x1xf32>
    %139 = tpu.reciprocal %138 {approx = true} : vector<8x1xf32> -> vector<8x1xf32>
    %140 = vector.broadcast %139 : vector<8x1xf32> to vector<8x8xf32>
    %141 = arith.mulf %136, %140 : vector<8x8xf32>
    %142 = arith.truncf %141 : vector<8x8xf32> to vector<8x8xbf16>
    %cst_52 = arith.constant dense<0.000000e+00> : vector<8x4xf32>
    %143 = tpu.matmul %142, %130, %cst_52 {dimension_numbers = #tpu.dot_dimension_numbers<[1], [0], [0], [1], [0, 0, 1, 1], [], []>} : vector<8x8xbf16>, vector<8x4xbf16>, vector<8x4xf32> -> vector<8x4xf32>
    %144 = arith.truncf %143 : vector<8x4xf32> to vector<8x4xbf16>
    %145 = vector.extract_strided_slice %26 {offsets = [20, 0], sizes = [4, 32], strides = [1, 1]} : vector<32x32xbf16> to vector<4x32xbf16>
    %cst_53 = arith.constant dense<0.000000e+00> : vector<8x32xf32>
    %146 = tpu.matmul %144, %145, %cst_53 {dimension_numbers = #tpu.dot_dimension_numbers<[1], [0], [0], [1], [0, 0, 1, 1], [], []>} : vector<8x4xbf16>, vector<4x32xbf16>, vector<8x32xf32> -> vector<8x32xf32>
    %147 = arith.addf %127, %146 : vector<8x32xf32>
    %148 = vector.extract_strided_slice %23 {offsets = [0, 24], sizes = [8, 4], strides = [1, 1]} : vector<8x32xbf16> to vector<8x4xbf16>
    %149 = vector.extract_strided_slice %24 {offsets = [0, 24], sizes = [8, 4], strides = [1, 1]} : vector<8x32xbf16> to vector<8x4xbf16>
    %150 = vector.extract_strided_slice %25 {offsets = [0, 24], sizes = [8, 4], strides = [1, 1]} : vector<8x32xbf16> to vector<8x4xbf16>
    %cst_54 = arith.constant dense<0.000000e+00> : vector<8x8xf32>
    %151 = tpu.matmul %148, %149, %cst_54 {dimension_numbers = #tpu.dot_dimension_numbers<[1], [1], [0], [0], [0, 0, 1, 0], [], []>} : vector<8x4xbf16>, vector<8x4xbf16>, vector<8x8xf32> -> vector<8x8xf32>
    %cst_55 = arith.constant dense<0xFF800000> : vector<8xf32>
    %152 = vector.multi_reduction <maximumf>, %151, %cst_55 [1] : vector<8x8xf32> to vector<8xf32>
    %153 = vector.shape_cast %152 : vector<8xf32> to vector<8x1xf32>
    %154 = vector.broadcast %153 : vector<8x1xf32> to vector<8x8xf32>
    %155 = arith.subf %151, %154 : vector<8x8xf32>
    %156 = math.exp %155 : vector<8x8xf32>
    %cst_56 = arith.constant dense<0.000000e+00> : vector<8xf32>
    %157 = vector.multi_reduction <add>, %156, %cst_56 [1] : vector<8x8xf32> to vector<8xf32>
    %158 = vector.shape_cast %157 : vector<8xf32> to vector<8x1xf32>
    %159 = tpu.reciprocal %158 {approx = true} : vector<8x1xf32> -> vector<8x1xf32>
    %160 = vector.broadcast %159 : vector<8x1xf32> to vector<8x8xf32>
    %161 = arith.mulf %156, %160 : vector<8x8xf32>
    %162 = arith.truncf %161 : vector<8x8xf32> to vector<8x8xbf16>
    %cst_57 = arith.constant dense<0.000000e+00> : vector<8x4xf32>
    %163 = tpu.matmul %162, %150, %cst_57 {dimension_numbers = #tpu.dot_dimension_numbers<[1], [0], [0], [1], [0, 0, 1, 1], [], []>} : vector<8x8xbf16>, vector<8x4xbf16>, vector<8x4xf32> -> vector<8x4xf32>
    %164 = arith.truncf %163 : vector<8x4xf32> to vector<8x4xbf16>
    %165 = vector.extract_strided_slice %26 {offsets = [24, 0], sizes = [4, 32], strides = [1, 1]} : vector<32x32xbf16> to vector<4x32xbf16>
    %cst_58 = arith.constant dense<0.000000e+00> : vector<8x32xf32>
    %166 = tpu.matmul %164, %165, %cst_58 {dimension_numbers = #tpu.dot_dimension_numbers<[1], [0], [0], [1], [0, 0, 1, 1], [], []>} : vector<8x4xbf16>, vector<4x32xbf16>, vector<8x32xf32> -> vector<8x32xf32>
    %167 = arith.addf %147, %166 : vector<8x32xf32>
    %168 = vector.extract_strided_slice %23 {offsets = [0, 28], sizes = [8, 4], strides = [1, 1]} : vector<8x32xbf16> to vector<8x4xbf16>
    %169 = vector.extract_strided_slice %24 {offsets = [0, 28], sizes = [8, 4], strides = [1, 1]} : vector<8x32xbf16> to vector<8x4xbf16>
    %170 = vector.extract_strided_slice %25 {offsets = [0, 28], sizes = [8, 4], strides = [1, 1]} : vector<8x32xbf16> to vector<8x4xbf16>
    %cst_59 = arith.constant dense<0.000000e+00> : vector<8x8xf32>
    %171 = tpu.matmul %168, %169, %cst_59 {dimension_numbers = #tpu.dot_dimension_numbers<[1], [1], [0], [0], [0, 0, 1, 0], [], []>} : vector<8x4xbf16>, vector<8x4xbf16>, vector<8x8xf32> -> vector<8x8xf32>
    %cst_60 = arith.constant dense<0xFF800000> : vector<8xf32>
    %172 = vector.multi_reduction <maximumf>, %171, %cst_60 [1] : vector<8x8xf32> to vector<8xf32>
    %173 = vector.shape_cast %172 : vector<8xf32> to vector<8x1xf32>
    %174 = vector.broadcast %173 : vector<8x1xf32> to vector<8x8xf32>
    %175 = arith.subf %171, %174 : vector<8x8xf32>
    %176 = math.exp %175 : vector<8x8xf32>
    %cst_61 = arith.constant dense<0.000000e+00> : vector<8xf32>
    %177 = vector.multi_reduction <add>, %176, %cst_61 [1] : vector<8x8xf32> to vector<8xf32>
    %178 = vector.shape_cast %177 : vector<8xf32> to vector<8x1xf32>
    %179 = tpu.reciprocal %178 {approx = true} : vector<8x1xf32> -> vector<8x1xf32>
    %180 = vector.broadcast %179 : vector<8x1xf32> to vector<8x8xf32>
    %181 = arith.mulf %176, %180 : vector<8x8xf32>
    %182 = arith.truncf %181 : vector<8x8xf32> to vector<8x8xbf16>
    %cst_62 = arith.constant dense<0.000000e+00> : vector<8x4xf32>
    %183 = tpu.matmul %182, %170, %cst_62 {dimension_numbers = #tpu.dot_dimension_numbers<[1], [0], [0], [1], [0, 0, 1, 1], [], []>} : vector<8x8xbf16>, vector<8x4xbf16>, vector<8x4xf32> -> vector<8x4xf32>
    %184 = arith.truncf %183 : vector<8x4xf32> to vector<8x4xbf16>
    %185 = vector.extract_strided_slice %26 {offsets = [28, 0], sizes = [4, 32], strides = [1, 1]} : vector<32x32xbf16> to vector<4x32xbf16>
    %cst_63 = arith.constant dense<0.000000e+00> : vector<8x32xf32>
    %186 = tpu.matmul %184, %185, %cst_63 {dimension_numbers = #tpu.dot_dimension_numbers<[1], [0], [0], [1], [0, 0, 1, 1], [], []>} : vector<8x4xbf16>, vector<4x32xbf16>, vector<8x32xf32> -> vector<8x32xf32>
    %187 = arith.addf %167, %186 : vector<8x32xf32>
    %c0_64 = arith.constant 0 : index
    %c0_65 = arith.constant 0 : index
    %188 = vector.load %arg11[%c0_64, %c0_65] : memref<1x32xf32, #tpu.memory_space<vmem>>, vector<1x32xf32>
    %189 = vector.broadcast %188 : vector<1x32xf32> to vector<8x32xf32>
    %190 = arith.addf %187, %189 : vector<8x32xf32>
    %191 = arith.truncf %190 : vector<8x32xf32> to vector<8x32xbf16>
    %c0_66 = arith.constant 0 : index
    %c0_67 = arith.constant 0 : index
    %192 = vector.load %arg12[%c0_66, %c0_67] : memref<32x32xbf16, #tpu.memory_space<vmem>>, vector<32x32xbf16>
    %cst_68 = arith.constant dense<0.000000e+00> : vector<8x32xf32>
    %193 = tpu.matmul %191, %192, %cst_68 {dimension_numbers = #tpu.dot_dimension_numbers<[1], [0], [0], [1], [0, 0, 1, 1], [], []>} : vector<8x32xbf16>, vector<32x32xbf16>, vector<8x32xf32> -> vector<8x32xf32>
    %c0_69 = arith.constant 0 : index
    %c0_70 = arith.constant 0 : index
    %194 = vector.load %arg13[%c0_69, %c0_70] : memref<1x32xf32, #tpu.memory_space<vmem>>, vector<1x32xf32>
    %195 = vector.broadcast %194 : vector<1x32xf32> to vector<8x32xf32>
    %196 = arith.addf %193, %195 : vector<8x32xf32>
    %c0_71 = arith.constant 0 : index
    %c0_72 = arith.constant 0 : index
    %c0_73 = arith.constant 0 : index
    %197 = vector.load %arg14[%c0_71, %c0_72, %c0_73] : memref<1x8x32xf32, #tpu.memory_space<vmem>>, vector<1x8x32xf32>
    %198 = vector.shape_cast %197 : vector<1x8x32xf32> to vector<8x32xf32>
    %199 = vector.shape_cast %196 : vector<8x32xf32> to vector<1x8x32xf32>
    tpu.vector_store %arg14[%c0_71, %c0_72, %c0_73], %199 {strides = array<i32>} : memref<1x8x32xf32, #tpu.memory_space<vmem>>, vector<1x8x32xf32>,
    return
  }
  func.func @transform_0(%arg0: i32) -> (i32, i32, i32) {
    %c0_i32 = arith.constant 0 : i32
    %c0_i32_0 = arith.constant 0 : i32
    %c0_i32_1 = arith.constant 0 : i32
    return %arg0, %c0_i32, %c0_i32_0 : i32, i32, i32
  }
  func.func @transform_1(%arg0: i32) -> (i32, i32) {
    %c0_i32 = arith.constant 0 : i32
    %c0_i32_0 = arith.constant 0 : i32
    %c0_i32_1 = arith.constant 0 : i32
    return %c0_i32, %c0_i32_0 : i32, i32
  }
  func.func @transform_2(%arg0: i32) -> (i32, i32) {
    %c0_i32 = arith.constant 0 : i32
    %c0_i32_0 = arith.constant 0 : i32
    %c0_i32_1 = arith.constant 0 : i32
    return %c0_i32, %c0_i32_0 : i32, i32
  }
  func.func @transform_3(%arg0: i32) -> (i32, i32) {
    %c0_i32 = arith.constant 0 : i32
    %c0_i32_0 = arith.constant 0 : i32
    %c0_i32_1 = arith.constant 0 : i32
    return %c0_i32, %c0_i32_0 : i32, i32
  }
  func.func @transform_4(%arg0: i32) -> (i32, i32) {
    %c0_i32 = arith.constant 0 : i32
    %c0_i32_0 = arith.constant 0 : i32
    %c0_i32_1 = arith.constant 0 : i32
    return %c0_i32, %c0_i32_0 : i32, i32
  }
  func.func @transform_5(%arg0: i32) -> (i32, i32) {
    %c0_i32 = arith.constant 0 : i32
    %c0_i32_0 = arith.constant 0 : i32
    %c0_i32_1 = arith.constant 0 : i32
    return %c0_i32, %c0_i32_0 : i32, i32
  }
  func.func @transform_6(%arg0: i32) -> (i32, i32) {
    %c0_i32 = arith.constant 0 : i32
    %c0_i32_0 = arith.constant 0 : i32
    %c0_i32_1 = arith.constant 0 : i32
    return %c0_i32, %c0_i32_0 : i32, i32
  }
  func.func @transform_7(%arg0: i32) -> (i32, i32) {
    %c0_i32 = arith.constant 0 : i32
    %c0_i32_0 = arith.constant 0 : i32
    %c0_i32_1 = arith.constant 0 : i32
    return %c0_i32, %c0_i32_0 : i32, i32
  }
  func.func @transform_8(%arg0: i32) -> (i32, i32) {
    %c0_i32 = arith.constant 0 : i32
    %c0_i32_0 = arith.constant 0 : i32
    %c0_i32_1 = arith.constant 0 : i32
    return %c0_i32, %c0_i32_0 : i32, i32
  }
  func.func @transform_9(%arg0: i32) -> (i32, i32) {
    %c0_i32 = arith.constant 0 : i32
    %c0_i32_0 = arith.constant 0 : i32
    %c0_i32_1 = arith.constant 0 : i32
    return %c0_i32, %c0_i32_0 : i32, i32
  }
  func.func @transform_10(%arg0: i32) -> (i32, i32) {
    %c0_i32 = arith.constant 0 : i32
    %c0_i32_0 = arith.constant 0 : i32
    %c0_i32_1 = arith.constant 0 : i32
    return %c0_i32, %c0_i32_0 : i32, i32
  }
  func.func @transform_11(%arg0: i32) -> (i32, i32) {
    %c0_i32 = arith.constant 0 : i32
    %c0_i32_0 = arith.constant 0 : i32
    %c0_i32_1 = arith.constant 0 : i32
    return %c0_i32, %c0_i32_0 : i32, i32
  }
  func.func @transform_12(%arg0: i32) -> (i32, i32) {
    %c0_i32 = arith.constant 0 : i32
    %c0_i32_0 = arith.constant 0 : i32
    %c0_i32_1 = arith.constant 0 : i32
    return %c0_i32, %c0_i32_0 : i32, i32
  }
  func.func @transform_13(%arg0: i32) -> (i32, i32, i32) {
    %c0_i32 = arith.constant 0 : i32
    %c0_i32_0 = arith.constant 0 : i32
    %c0_i32_1 = arith.constant 0 : i32
    return %arg0, %c0_i32, %c0_i32_0 : i32, i32, i32
  }
}

</mosaic_0001>

<llo_original>
// kernel: tpu_custom_call.1
$region0: #{tpu_custom_call.1}
  #allocation0 [shape = 'u32[]', space=smem, size = 0x4, offset = 0x4, fixed_abs, tag = 'smem constant byte address 0x4 - core index']
  #allocation1 [shape = 'u32[144,128]{1,0:T(1,128)}', space=vmem, size = 0x12000, scoped, tag = 'internal scratch']
  %s0 = inlined_call_operand.hbm [shape: bf16[2,8,16], index: 0, kind: input, shape index: {}]
  %s1 = inlined_call_operand.hbm [shape: bf16[16,32], index: 1, kind: input, shape index: {}]
  %s2 = inlined_call_operand.vmem [shape: f32[1,32], index: 2, kind: input, shape index: {}]
  %s3 = inlined_call_operand.hbm [shape: bf16[32,32], index: 3, kind: input, shape index: {}]
  %s4 = inlined_call_operand.hbm [shape: bf16[32,32], index: 4, kind: input, shape index: {}]
  %s5 = inlined_call_operand.vmem [shape: bf16[32,32], index: 5, kind: input, shape index: {}]
  %s6 = inlined_call_operand.vmem [shape: f32[1,32], index: 6, kind: input, shape index: {}]
  %s7 = inlined_call_operand.hbm [shape: f32[1,32], index: 7, kind: input, shape index: {}]
  %s8 = inlined_call_operand.hbm [shape: f32[1,32], index: 8, kind: input, shape index: {}]
  %s9 = inlined_call_operand.vmem [shape: bf16[32,32], index: 9, kind: input, shape index: {}]
  %s10 = inlined_call_operand.vmem [shape: f32[1,32], index: 10, kind: input, shape index: {}]
  %s11 = inlined_call_operand.hbm [shape: bf16[32,32], index: 11, kind: input, shape index: {}]
  %s12 = inlined_call_operand.vmem [shape: f32[1,32], index: 12, kind: input, shape index: {}]
  %s13 = inlined_call_operand.hbm [shape: f32[2,8,32], index: 13, kind: output, shape index: {}]
  %s14 = sld [smem:[#allocation0]]
  $region113: #{tpu_custom_call.1} parent=0
    _
  %s16 = ssub.s32 1, %s14
  %s17 = scalar_select 0, %s16, %s14
  $region1: #{tpu_custom_call.1} parent=0
    #allocation2 [shape = 'u8[4096]{0}', space=vmem, size = 0x1000, scoped, tag = 'input window, operand 0']
    #allocation3 [shape = 's32[2]{0}', space=sflag, size = 0x8, scoped, tag = 'scoped memory for tpu_custom_call.1']
    #allocation4 [shape = 's32[2]{0}', space=sflag, size = 0x8, scoped, tag = 'scoped memory for tpu_custom_call.1']
    #allocation5 [shape = 'u8[4096]{0}', space=vmem, size = 0x1000, scoped, tag = 'input window, operand 1, single buffered']
    #allocation6 [shape = 's32[1]{0}', space=sflag, size = 0x4, scoped, tag = 'scoped memory for tpu_custom_call.1']
    #allocation7 [shape = 'u8[8192]{0}', space=vmem, size = 0x2000, scoped, tag = 'input window, operand 3, single buffered']
    #allocation8 [shape = 'u8[8192]{0}', space=vmem, size = 0x2000, scoped, tag = 'input window, operand 4, single buffered']
    #allocation9 [shape = 's32[1]{0}', space=sflag, size = 0x4, scoped, tag = 'scoped memory for tpu_custom_call.1']
    #allocation10 [shape = 'u8[512]{0}', space=vmem, size = 0x400, scoped, tag = 'input window, operand 7, single buffered']
    #allocation11 [shape = 'u8[512]{0}', space=vmem, size = 0x400, scoped, tag = 'input window, operand 8, single buffered']
    #allocation12 [shape = 's32[1]{0}', space=sflag, size = 0x4, scoped, tag = 'scoped memory for tpu_custom_call.1']
    #allocation13 [shape = 'u8[8192]{0}', space=vmem, size = 0x2000, scoped, tag = 'input window, operand 11, single buffered']
    #allocation14 [shape = 'u8[8192]{0}', space=vmem, size = 0x2000, scoped, tag = 'output window, operand 0']
    %18 = vsyncpa [#allocation3], 0
    %s19 = scalar_lea.sflag [#allocation3], 1
    %20 = vsyncpa %s19, 0
    %21 = vsyncpa [#allocation6], 0
    %22 = vsyncpa [#allocation9], 0
    %23 = vsyncpa [#allocation12], 0
    %24 = vsyncpa [#allocation4], 0
    %s25 = scalar_lea.sflag [#allocation4], 1
    %26 = vsyncpa %s25, 0
    loop: start=0, step=1, limit=4
    $region2: #{tpu_custom_call.1} parent=1 // loop_pre_header
      _
    $region3: #{tpu_custom_call.1} parent=1 // loop_header
      %s28 = sphi 0, %s32
      %p29 = scmp.ge.s32.totalorder %s28, 4
      %s38 = sphi 0, %s40
      %s41 = sphi 0, %s38
      %s42 = sphi 0, %s41
      %s58 = sphi 0, %s42
      %s62 = sphi 0, %s62
      %s64 = sphi 0, %s62
      %s65 = sphi 0, %s64
      %s79 = sphi 0, %s65
      %s83 = sphi 0, %s83
      %s85 = sphi 0, %s83
      %s86 = sphi 0, %s85
      %s100 = sphi 0, %s86
      %s104 = sphi 0, %s104
      %s106 = sphi 0, %s104
      %s107 = sphi 0, %s106
      %s121 = sphi 0, %s107
      %s125 = sphi 0, %s125
      %s127 = sphi 0, %s125
      %s128 = sphi 0, %s127
      %s142 = sphi 0, %s128
      %s146 = sphi 0, %s146
      %s148 = sphi 0, %s146
      %s149 = sphi 0, %s148
      %s163 = sphi 0, %s149
      %s167 = sphi 0, %s167
      %s169 = sphi 0, %s167
      %s170 = sphi 0, %s169
      %s184 = sphi 0, %s170
      %s188 = sphi 0, %s188
      %s190 = sphi 0, %s188
      %s191 = sphi 0, %s190
      %s205 = sphi 0, %s191
      %s209 = sphi 0, %s209
      %s211 = sphi 0, %s209
      %s212 = sphi 0, %s211
      %s226 = sphi 0, %s212
      %s230 = sphi 0, %s230
      %s232 = sphi 0, %s230
      %s233 = sphi 0, %s232
      %s247 = sphi 0, %s233
      %s251 = sphi 0, %s251
      %s253 = sphi 0, %s251
      %s254 = sphi 0, %s253
      %s268 = sphi 0, %s254
      %s272 = sphi 0, %s272
      %s274 = sphi 0, %s272
      %s275 = sphi 0, %s274
      %s289 = sphi 0, %s275
      %s293 = sphi 0, %s293
      %s295 = sphi 0, %s293
      %s296 = sphi 0, %s295
      %s310 = sphi 0, %s296
      %s316 = sphi 0, %s318
      %s319 = sphi 0, %s316
      %s320 = sphi 0, %s319
      %s336 = sphi 0, %s320
    $region4: #{tpu_custom_call.1} parent=1 // loop_header_branch
      %31 = sbr.rel (%p29) target = $region8
    $region5: #{tpu_custom_call.1} parent=1 // loop_body
      %s33 = ssub.s32 %s28, 1
      %s34 = ssub.s32 %s28, 2
      %s35 = sadd.s32 %s28, 1
      %s36 = ssub.s32 %s28, %s35
      %p37 = scmp.eq.s32.totalorder %s36, 0
      %s39 = sadd.s32 %s38, 1
      %s40 = scalar_select %p37, %s38, %s39
      %p43 = pneg %p37
      %p44 = scmp.eq.s32.totalorder %s28, 1
      %p45 = por %p43, %p44
      %p46 = scmp.ne.s32.totalorder %s38, %s41
      %p47 = scmp.eq.s32.totalorder %s28, 0
      %p48 = por %p46, %p47
      %p49 = scmp.ne.s32.totalorder %s38, %s41
      %p50 = scmp.eq.s32.totalorder %s33, 1
      %p51 = por %p49, %p50
      %p52 = scmp.ne.s32.totalorder %s41, %s42
      %p53 = scmp.eq.s32.totalorder %s33, 0
      %p54 = por %p52, %p53
      %p55 = scmp.ne.s32.totalorder %s41, %s42
      %p56 = scmp.eq.s32.totalorder %s34, 1
      %p57 = por %p55, %p56
      %p59 = scmp.ne.s32.totalorder %s42, %s58
      %p60 = scmp.eq.s32.totalorder %s34, 0
      %p61 = por %p59, %p60
      %s63 = sadd.s32 %s62, 1
      %p66 = scmp.eq.s32.totalorder %s28, 1
      %p67 = scmp.ne.s32.totalorder %s62, %s64
      %p68 = scmp.eq.s32.totalorder %s28, 0
      %p69 = por %p67, %p68
      %p70 = scmp.ne.s32.totalorder %s62, %s64
      %p71 = scmp.eq.s32.totalorder %s33, 1
      %p72 = por %p70, %p71
      %p73 = scmp.ne.s32.totalorder %s64, %s65
      %p74 = scmp.eq.s32.totalorder %s33, 0
      %p75 = por %p73, %p74
      %p76 = scmp.ne.s32.totalorder %s64, %s65
      %p77 = scmp.eq.s32.totalorder %s34, 1
      %p78 = por %p76, %p77
      %p80 = scmp.ne.s32.totalorder %s65, %s79
      %p81 = scmp.eq.s32.totalorder %s34, 0
      %p82 = por %p80, %p81
      %s84 = sadd.s32 %s83, 1
      %p87 = scmp.eq.s32.totalorder %s28, 1
      %p88 = scmp.ne.s32.totalorder %s83, %s85
      %p89 = scmp.eq.s32.totalorder %s28, 0
      %p90 = por %p88, %p89
      %p91 = scmp.ne.s32.totalorder %s83, %s85
      %p92 = scmp.eq.s32.totalorder %s33, 1
      %p93 = por %p91, %p92
      %p94 = scmp.ne.s32.totalorder %s85, %s86
      %p95 = scmp.eq.s32.totalorder %s33, 0
      %p96 = por %p94, %p95
      %p97 = scmp.ne.s32.totalorder %s85, %s86
      %p98 = scmp.eq.s32.totalorder %s34, 1
      %p99 = por %p97, %p98
      %p101 = scmp.ne.s32.totalorder %s86, %s100
      %p102 = scmp.eq.s32.totalorder %s34, 0
      %p103 = por %p101, %p102
      %s105 = sadd.s32 %s104, 1
      %p108 = scmp.eq.s32.totalorder %s28, 1
      %p109 = scmp.ne.s32.totalorder %s104, %s106
      %p110 = scmp.eq.s32.totalorder %s28, 0
      %p111 = por %p109, %p110
      %p112 = scmp.ne.s32.totalorder %s104, %s106
      %p113 = scmp.eq.s32.totalorder %s33, 1
      %p114 = por %p112, %p113
      %p115 = scmp.ne.s32.totalorder %s106, %s107
      %p116 = scmp.eq.s32.totalorder %s33, 0
      %p117 = por %p115, %p116
      %p118 = scmp.ne.s32.totalorder %s106, %s107
      %p119 = scmp.eq.s32.totalorder %s34, 1
      %p120 = por %p118, %p119
      %p122 = scmp.ne.s32.totalorder %s107, %s121
      %p123 = scmp.eq.s32.totalorder %s34, 0
      %p124 = por %p122, %p123
      %s126 = sadd.s32 %s125, 1
      %p129 = scmp.eq.s32.totalorder %s28, 1
      %p130 = scmp.ne.s32.totalorder %s125, %s127
      %p131 = scmp.eq.s32.totalorder %s28, 0
      %p132 = por %p130, %p131
      %p133 = scmp.ne.s32.totalorder %s125, %s127
      %p134 = scmp.eq.s32.totalorder %s33, 1
      %p135 = por %p133, %p134
      %p136 = scmp.ne.s32.totalorder %s127, %s128
      %p137 = scmp.eq.s32.totalorder %s33, 0
      %p138 = por %p136, %p137
      %p139 = scmp.ne.s32.totalorder %s127, %s128
      %p140 = scmp.eq.s32.totalorder %s34, 1
      %p141 = por %p139, %p140
      %p143 = scmp.ne.s32.totalorder %s128, %s142
      %p144 = scmp.eq.s32.totalorder %s34, 0
      %p145 = por %p143, %p144
      %s147 = sadd.s32 %s146, 1
      %p150 = scmp.eq.s32.totalorder %s28, 1
      %p151 = scmp.ne.s32.totalorder %s146, %s148
      %p152 = scmp.eq.s32.totalorder %s28, 0
      %p153 = por %p151, %p152
      %p154 = scmp.ne.s32.totalorder %s146, %s148
      %p155 = scmp.eq.s32.totalorder %s33, 1
      %p156 = por %p154, %p155
      %p157 = scmp.ne.s32.totalorder %s148, %s149
      %p158 = scmp.eq.s32.totalorder %s33, 0
      %p159 = por %p157, %p158
      %p160 = scmp.ne.s32.totalorder %s148, %s149
      %p161 = scmp.eq.s32.totalorder %s34, 1
      %p162 = por %p160, %p161
      %p164 = scmp.ne.s32.totalorder %s149, %s163
      %p165 = scmp.eq.s32.totalorder %s34, 0
      %p166 = por %p164, %p165
      %s168 = sadd.s32 %s167, 1
      %p171 = scmp.eq.s32.totalorder %s28, 1
      %p172 = scmp.ne.s32.totalorder %s167, %s169
      %p173 = scmp.eq.s32.totalorder %s28, 0
      %p174 = por %p172, %p173
      %p175 = scmp.ne.s32.totalorder %s167, %s169
      %p176 = scmp.eq.s32.totalorder %s33, 1
      %p177 = por %p175, %p176
      %p178 = scmp.ne.s32.totalorder %s169, %s170
      %p179 = scmp.eq.s32.totalorder %s33, 0
      %p180 = por %p178, %p179
      %p181 = scmp.ne.s32.totalorder %s169, %s170
      %p182 = scmp.eq.s32.totalorder %s34, 1
      %p183 = por %p181, %p182
      %p185 = scmp.ne.s32.totalorder %s170, %s184
      %p186 = scmp.eq.s32.totalorder %s34, 0
      %p187 = por %p185, %p186
      %s189 = sadd.s32 %s188, 1
      %p192 = scmp.eq.s32.totalorder %s28, 1
      %p193 = scmp.ne.s32.totalorder %s188, %s190
      %p194 = scmp.eq.s32.totalorder %s28, 0
      %p195 = por %p193, %p194
      %p196 = scmp.ne.s32.totalorder %s188, %s190
      %p197 = scmp.eq.s32.totalorder %s33, 1
      %p198 = por %p196, %p197
      %p199 = scmp.ne.s32.totalorder %s190, %s191
      %p200 = scmp.eq.s32.totalorder %s33, 0
      %p201 = por %p199, %p200
      %p202 = scmp.ne.s32.totalorder %s190, %s191
      %p203 = scmp.eq.s32.totalorder %s34, 1
      %p204 = por %p202, %p203
      %p206 = scmp.ne.s32.totalorder %s191, %s205
      %p207 = scmp.eq.s32.totalorder %s34, 0
      %p208 = por %p206, %p207
      %s210 = sadd.s32 %s209, 1
      %p213 = scmp.eq.s32.totalorder %s28, 1
      %p214 = scmp.ne.s32.totalorder %s209, %s211
      %p215 = scmp.eq.s32.totalorder %s28, 0
      %p216 = por %p214, %p215
      %p217 = scmp.ne.s32.totalorder %s209, %s211
      %p218 = scmp.eq.s32.totalorder %s33, 1
      %p219 = por %p217, %p218
      %p220 = scmp.ne.s32.totalorder %s211, %s212
      %p221 = scmp.eq.s32.totalorder %s33, 0
      %p222 = por %p220, %p221
      %p223 = scmp.ne.s32.totalorder %s211, %s212
      %p224 = scmp.eq.s32.totalorder %s34, 1
      %p225 = por %p223, %p224
      %p227 = scmp.ne.s32.totalorder %s212, %s226
      %p228 = scmp.eq.s32.totalorder %s34, 0
      %p229 = por %p227, %p228
      %s231 = sadd.s32 %s230, 1
      %p234 = scmp.eq.s32.totalorder %s28, 1
      %p235 = scmp.ne.s32.totalorder %s230, %s232
      %p236 = scmp.eq.s32.totalorder %s28, 0
      %p237 = por %p235, %p236
      %p238 = scmp.ne.s32.totalorder %s230, %s232
      %p239 = scmp.eq.s32.totalorder %s33, 1
      %p240 = por %p238, %p239
      %p241 = scmp.ne.s32.totalorder %s232, %s233
      %p242 = scmp.eq.s32.totalorder %s33, 0
      %p243 = por %p241, %p242
      %p244 = scmp.ne.s32.totalorder %s232, %s233
      %p245 = scmp.eq.s32.totalorder %s34, 1
      %p246 = por %p244, %p245
      %p248 = scmp.ne.s32.totalorder %s233, %s247
      %p249 = scmp.eq.s32.totalorder %s34, 0
      %p250 = por %p248, %p249
      %s252 = sadd.s32 %s251, 1
      %p255 = scmp.eq.s32.totalorder %s28, 1
      %p256 = scmp.ne.s32.totalorder %s251, %s253
      %p257 = scmp.eq.s32.totalorder %s28, 0
      %p258 = por %p256, %p257
      %p259 = scmp.ne.s32.totalorder %s251, %s253
      %p260 = scmp.eq.s32.totalorder %s33, 1
      %p261 = por %p259, %p260
      %p262 = scmp.ne.s32.totalorder %s253, %s254
      %p263 = scmp.eq.s32.totalorder %s33, 0
      %p264 = por %p262, %p263
      %p265 = scmp.ne.s32.totalorder %s253, %s254
      %p266 = scmp.eq.s32.totalorder %s34, 1
      %p267 = por %p265, %p266
      %p269 = scmp.ne.s32.totalorder %s254, %s268
      %p270 = scmp.eq.s32.totalorder %s34, 0
      %p271 = por %p269, %p270
      %s273 = sadd.s32 %s272, 1
      %p276 = scmp.eq.s32.totalorder %s28, 1
      %p277 = scmp.ne.s32.totalorder %s272, %s274
      %p278 = scmp.eq.s32.totalorder %s28, 0
      %p279 = por %p277, %p278
      %p280 = scmp.ne.s32.totalorder %s272, %s274
      %p281 = scmp.eq.s32.totalorder %s33, 1
      %p282 = por %p280, %p281
      %p283 = scmp.ne.s32.totalorder %s274, %s275
      %p284 = scmp.eq.s32.totalorder %s33, 0
      %p285 = por %p283, %p284
      %p286 = scmp.ne.s32.totalorder %s274, %s275
      %p287 = scmp.eq.s32.totalorder %s34, 1
      %p288 = por %p286, %p287
      %p290 = scmp.ne.s32.totalorder %s275, %s289
      %p291 = scmp.eq.s32.totalorder %s34, 0
      %p292 = por %p290, %p291
      %s294 = sadd.s32 %s293, 1
      %p297 = scmp.eq.s32.totalorder %s28, 1
      %p298 = scmp.ne.s32.totalorder %s293, %s295
      %p299 = scmp.eq.s32.totalorder %s28, 0
      %p300 = por %p298, %p299
      %p301 = scmp.ne.s32.totalorder %s293, %s295
      %p302 = scmp.eq.s32.totalorder %s33, 1
      %p303 = por %p301, %p302
      %p304 = scmp.ne.s32.totalorder %s295, %s296
      %p305 = scmp.eq.s32.totalorder %s33, 0
      %p306 = por %p304, %p305
      %p307 = scmp.ne.s32.totalorder %s295, %s296
      %p308 = scmp.eq.s32.totalorder %s34, 1
      %p309 = por %p307, %p308
      %p311 = scmp.ne.s32.totalorder %s296, %s310
      %p312 = scmp.eq.s32.totalorder %s34, 0
      %p313 = por %p311, %p312
      %s314 = ssub.s32 %s28, %s35
      %p315 = scmp.eq.s32.totalorder %s314, 0
      %s317 = sadd.s32 %s316, 1
      %s318 = scalar_select %p315, %s316, %s317
      %p321 = pneg %p315
      %p322 = scmp.eq.s32.totalorder %s28, 1
      %p323 = por %p321, %p322
      %p324 = scmp.ne.s32.totalorder %s316, %s319
      %p325 = scmp.eq.s32.totalorder %s28, 0
      %p326 = por %p324, %p325
      %p327 = scmp.ne.s32.totalorder %s316, %s319
      %p328 = scmp.eq.s32.totalorder %s33, 1
      %p329 = por %p327, %p328
      %p330 = scmp.ne.s32.totalorder %s319, %s320
      %p331 = scmp.eq.s32.totalorder %s33, 0
      %p332 = por %p330, %p331
      %p333 = scmp.ne.s32.totalorder %s319, %s320
      %p334 = scmp.eq.s32.totalorder %s34, 1
      %p335 = por %p333, %p334
      %p337 = scmp.ne.s32.totalorder %s320, %s336
      %p338 = scmp.eq.s32.totalorder %s34, 0
      %p339 = por %p337, %p338
      %p340 = scmp.le.s32.totalorder 1, %s28
      %p341 = scmp.lt.s32.totalorder %s28, 3
      %p342 = pnand %p340, %p341
      %p343 = pneg %p342
      // Predicated region
      $region9: #{tpu_custom_call.1} parent=5 // pred_check
        _
      $region10: #{tpu_custom_call.1} parent=5 // pred_check_branch
        %345 = sbr.rel (%p342) target = $region12
      $region11: #{tpu_custom_call.1} parent=5 // pred_region
        %s346 = ssub.s32 %s28, 1
        // Predicated region
        $region13: #{tpu_custom_call.1} parent=11 // pred_check
          %p347 = pneg %p75
        $region14: #{tpu_custom_call.1} parent=11 // pred_check_branch
          %349 = sbr.rel (%p347) target = $region16
        $region15: #{tpu_custom_call.1} parent=11 // pred_region
          %s351 = ssub.s32 128, 128
          %352 = vsyncadd [#allocation6], %s351
          %s353 = sshll.u32 [#allocation5], 4
          %s354 = int_to_ptr.vmem [resolvable:$true] %s353
          %359 = dma.hbm_to_vmem [thread:$0]  %s1, 128, %s354, [#allocation6], 64, 64, 4
        $region16: #{tpu_custom_call.1} parent=11 // pred_fallthru
          _
        // Predicated region
        $region17: #{tpu_custom_call.1} parent=11 // pred_check
          %p360 = pneg %p96
        $region18: #{tpu_custom_call.1} parent=11 // pred_check_branch
          %362 = sbr.rel (%p360) target = $region20
        $region19: #{tpu_custom_call.1} parent=11 // pred_region
          _
        $region20: #{tpu_custom_call.1} parent=11 // pred_fallthru
          _
        // Predicated region
        $region21: #{tpu_custom_call.1} parent=11 // pred_check
          %p363 = pneg %p117
        $region22: #{tpu_custom_call.1} parent=11 // pred_check_branch
          %365 = sbr.rel (%p363) target = $region24
        $region23: #{tpu_custom_call.1} parent=11 // pred_region
          %s367 = ssub.s32 256, 256
          %368 = vsyncadd [#allocation6], %s367
          %s369 = sshll.u32 [#allocation7], 4
          %s370 = int_to_ptr.vmem [resolvable:$true] %s369
          %375 = dma.hbm_to_vmem [thread:$0]  %s3, 256, %s370, [#allocation6], 64, 64, 4
        $region24: #{tpu_custom_call.1} parent=11 // pred_fallthru
          _
        // Predicated region
        $region25: #{tpu_custom_call.1} parent=11 // pred_check
          %p376 = pneg %p138
        $region26: #{tpu_custom_call.1} parent=11 // pred_check_branch
          %378 = sbr.rel (%p376) target = $region28
        $region27: #{tpu_custom_call.1} parent=11 // pred_region
          %s380 = ssub.s32 256, 256
          %381 = vsyncadd [#allocation9], %s380
          %s382 = sshll.u32 [#allocation8], 4
          %s383 = int_to_ptr.vmem [resolvable:$true] %s382
          %388 = dma.hbm_to_vmem [thread:$0]  %s4, 256, %s383, [#allocation9], 64, 64, 4
        $region28: #{tpu_custom_call.1} parent=11 // pred_fallthru
          _
        // Predicated region
        $region29: #{tpu_custom_call.1} parent=11 // pred_check
          %p389 = pneg %p159
        $region30: #{tpu_custom_call.1} parent=11 // pred_check_branch
          %391 = sbr.rel (%p389) target = $region32
        $region31: #{tpu_custom_call.1} parent=11 // pred_region
          _
        $region32: #{tpu_custom_call.1} parent=11 // pred_fallthru
          _
        // Predicated region
        $region33: #{tpu_custom_call.1} parent=11 // pred_check
          %p392 = pneg %p180
        $region34: #{tpu_custom_call.1} parent=11 // pred_check_branch
          %394 = sbr.rel (%p392) target = $region36
        $region35: #{tpu_custom_call.1} parent=11 // pred_region
          _
        $region36: #{tpu_custom_call.1} parent=11 // pred_fallthru
          _
        // Predicated region
        $region37: #{tpu_custom_call.1} parent=11 // pred_check
          %p395 = pneg %p201
        $region38: #{tpu_custom_call.1} parent=11 // pred_check_branch
          %397 = sbr.rel (%p395) target = $region40
        $region39: #{tpu_custom_call.1} parent=11 // pred_region
          %s399 = ssub.s32 16, 16
          %400 = vsyncadd [#allocation9], %s399
          %s402 = sshll.u32 [#allocation10], 4
          %s403 = int_to_ptr.vmem [resolvable:$true] %s402
          %405 = dma.hbm_to_vmem [thread:$0]  %s7, 16, %s403, [#allocation9]
        $region40: #{tpu_custom_call.1} parent=11 // pred_fallthru
          _
        // Predicated region
        $region41: #{tpu_custom_call.1} parent=11 // pred_check
          %p406 = pneg %p222
        $region42: #{tpu_custom_call.1} parent=11 // pred_check_branch
          %408 = sbr.rel (%p406) target = $region44
        $region43: #{tpu_custom_call.1} parent=11 // pred_region
          %s410 = ssub.s32 16, 16
          %411 = vsyncadd [#allocation12], %s410
          %s413 = sshll.u32 [#allocation11], 4
          %s414 = int_to_ptr.vmem [resolvable:$true] %s413
          %416 = dma.hbm_to_vmem [thread:$0]  %s8, 16, %s414, [#allocation12]
        $region44: #{tpu_custom_call.1} parent=11 // pred_fallthru
          _
        // Predicated region
        $region45: #{tpu_custom_call.1} parent=11 // pred_check
          %p417 = pneg %p243
        $region46: #{tpu_custom_call.1} parent=11 // pred_check_branch
          %419 = sbr.rel (%p417) target = $region48
        $region47: #{tpu_custom_call.1} parent=11 // pred_region
          _
        $region48: #{tpu_custom_call.1} parent=11 // pred_fallthru
          _
        // Predicated region
        $region49: #{tpu_custom_call.1} parent=11 // pred_check
          %p420 = pneg %p264
        $region50: #{tpu_custom_call.1} parent=11 // pred_check_branch
          %422 = sbr.rel (%p420) target = $region52
        $region51: #{tpu_custom_call.1} parent=11 // pred_region
          _
        $region52: #{tpu_custom_call.1} parent=11 // pred_fallthru
          _
        // Predicated region
        $region53: #{tpu_custom_call.1} parent=11 // pred_check
          %p423 = pneg %p285
        $region54: #{tpu_custom_call.1} parent=11 // pred_check_branch
          %425 = sbr.rel (%p423) target = $region56
        $region55: #{tpu_custom_call.1} parent=11 // pred_region
          %s427 = ssub.s32 256, 256
          %428 = vsyncadd [#allocation12], %s427
          %s429 = sshll.u32 [#allocation13], 4
          %s430 = int_to_ptr.vmem [resolvable:$true] %s429
          %435 = dma.hbm_to_vmem [thread:$0]  %s11, 256, %s430, [#allocation12], 64, 64, 4
        $region56: #{tpu_custom_call.1} parent=11 // pred_fallthru
          _
        // Predicated region
        $region57: #{tpu_custom_call.1} parent=11 // pred_check
          %p436 = pneg %p306
        $region58: #{tpu_custom_call.1} parent=11 // pred_check_branch
          %438 = sbr.rel (%p436) target = $region60
        $region59: #{tpu_custom_call.1} parent=11 // pred_region
          _
        $region60: #{tpu_custom_call.1} parent=11 // pred_fallthru
          _
      $region12: #{tpu_custom_call.1} parent=5 // pred_fallthru
        _
      %p439 = scmp.lt.s32.totalorder %s28, 2
      // Predicated region
      $region61: #{tpu_custom_call.1} parent=5 // pred_check
        %p440 = pneg %p439
      $region62: #{tpu_custom_call.1} parent=5 // pred_check_branch
        %442 = sbr.rel (%p440) target = $region64
      $region63: #{tpu_custom_call.1} parent=5 // pred_region
        // Predicated region
        $region65: #{tpu_custom_call.1} parent=63 // pred_check
          %p443 = pneg %p48
        $region66: #{tpu_custom_call.1} parent=63 // pred_check_branch
          %445 = sbr.rel (%p443) target = $region68
        $region67: #{tpu_custom_call.1} parent=63 // pred_region
          %s446 = sand.u32 %s38, 1
          %s447 = scalar_lea.sflag [#allocation3], %s446
          %s448 = sand.u32 %s38, 1
          %s449 = smul.addr %s448, 4
          %s450 = scalar_lea.vmem [#allocation2], %s449
          %s452 = ssub.s32 64, 64
          %453 = vsyncadd %s447, %s452
          %s454 = smul.addr %s28, 64
          %s455 = scalar_lea.hbm %s0, %s454
          %s457 = sshll.u32 %s450, 4
          %s458 = int_to_ptr.vmem [resolvable:$true] %s457
          %460 = dma.hbm_to_vmem [thread:$0]  %s455, 64, %s458, %s447
        $region68: #{tpu_custom_call.1} parent=63 // pred_fallthru
          _
      $region64: #{tpu_custom_call.1} parent=5 // pred_fallthru
        _
      %p461 = scmp.le.s32.totalorder 1, %s28
      %p462 = scmp.lt.s32.totalorder %s28, 3
      %p463 = pnand %p461, %p462
      %p464 = pneg %p463
      // Predicated region
      $region69: #{tpu_custom_call.1} parent=5 // pred_check
        _
      $region70: #{tpu_custom_call.1} parent=5 // pred_check_branch
        %466 = sbr.rel (%p463) target = $region72
      $region71: #{tpu_custom_call.1} parent=5 // pred_region
        %s467 = ssub.s32 %s28, 1
        %s468 = sand.u32 %s41, 1
        %s469 = scalar_lea.sflag [#allocation3], %s468
        %s470 = sand.u32 %s41, 1
        %s471 = smul.addr %s470, 4
        %s472 = scalar_lea.vmem [#allocation2], %s471
        // Predicated region
        $region73: #{tpu_custom_call.1} parent=71 // pred_check
          %p473 = pneg %p54
        $region74: #{tpu_custom_call.1} parent=71 // pred_check_branch
          %475 = sbr.rel (%p473) target = $region76
        $region75: #{tpu_custom_call.1} parent=71 // pred_region
          %476 = dma.done %s469, 64
        $region76: #{tpu_custom_call.1} parent=71 // pred_fallthru
          _
        // Predicated region
        $region77: #{tpu_custom_call.1} parent=71 // pred_check
          %p477 = pneg %p75
        $region78: #{tpu_custom_call.1} parent=71 // pred_check_branch
          %479 = sbr.rel (%p477) target = $region80
        $region79: #{tpu_custom_call.1} parent=71 // pred_region
          %480 = dma.done [#allocation6], 128
        $region80: #{tpu_custom_call.1} parent=71 // pred_fallthru
          _
        // Predicated region
        $region81: #{tpu_custom_call.1} parent=71 // pred_check
          %p481 = pneg %p117
        $region82: #{tpu_custom_call.1} parent=71 // pred_check_branch
          %483 = sbr.rel (%p481) target = $region84
        $region83: #{tpu_custom_call.1} parent=71 // pred_region
          %484 = dma.done [#allocation6], 256
        $region84: #{tpu_custom_call.1} parent=71 // pred_fallthru
          _
        // Predicated region
        $region85: #{tpu_custom_call.1} parent=71 // pred_check
          %p485 = pneg %p138
        $region86: #{tpu_custom_call.1} parent=71 // pred_check_branch
          %487 = sbr.rel (%p485) target = $region88
        $region87: #{tpu_custom_call.1} parent=71 // pred_region
          %488 = dma.done [#allocation9], 256
        $region88: #{tpu_custom_call.1} parent=71 // pred_fallthru
          _
        // Predicated region
        $region89: #{tpu_custom_call.1} parent=71 // pred_check
          %p489 = pneg %p201
        $region90: #{tpu_custom_call.1} parent=71 // pred_check_branch
          %491 = sbr.rel (%p489) target = $region92
        $region91: #{tpu_custom_call.1} parent=71 // pred_region
          %492 = dma.done [#allocation9], 16
        $region92: #{tpu_custom_call.1} parent=71 // pred_fallthru
          _
        // Predicated region
        $region93: #{tpu_custom_call.1} parent=71 // pred_check
          %p493 = pneg %p222
        $region94: #{tpu_custom_call.1} parent=71 // pred_check_branch
          %495 = sbr.rel (%p493) target = $region96
        $region95: #{tpu_custom_call.1} parent=71 // pred_region
          %496 = dma.done [#allocation12], 16
        $region96: #{tpu_custom_call.1} parent=71 // pred_fallthru
          _
        // Predicated region
        $region97: #{tpu_custom_call.1} parent=71 // pred_check
          %p497 = pneg %p285
        $region98: #{tpu_custom_call.1} parent=71 // pred_check_branch
          %499 = sbr.rel (%p497) target = $region100
        $region99: #{tpu_custom_call.1} parent=71 // pred_region
          %500 = dma.done [#allocation12], 256
        $region100: #{tpu_custom_call.1} parent=71 // pred_fallthru
          _
        %s501 = sand.u32 %s41, 1
        %s502 = scalar_lea.sflag [#allocation3], %s501
        %s503 = sand.u32 %s41, 1
        %s504 = smul.addr %s503, 4
        %s505 = scalar_lea.vmem [#allocation2], %s504
        %p506 = pneg %p54
        %p507 = pneg %p51
        %p508 = pneg %p75
        %p509 = pneg %p72
        %p510 = pneg %p96
        %p511 = pneg %p93
        %p512 = pneg %p117
        %p513 = pneg %p114
        %p514 = pneg %p138
        %p515 = pneg %p135
        %p516 = pneg %p159
        %p517 = pneg %p156
        %p518 = pneg %p180
        %p519 = pneg %p177
        %p520 = pneg %p201
        %p521 = pneg %p198
        %p522 = pneg %p222
        %p523 = pneg %p219
        %p524 = pneg %p243
        %p525 = pneg %p240
        %p526 = pneg %p264
        %p527 = pneg %p261
        %p528 = pneg %p285
        %p529 = pneg %p282
        %p530 = pneg %p306
        %p531 = pneg %p303
        %p532 = pneg %p332
        %p533 = pneg %p329
        %s534 = sand.u32 %s319, 1
        %s535 = scalar_lea.sflag [#allocation4], %s534
        %s536 = sand.u32 %s319, 1
        %s537 = smul.addr %s536, 8
        %s538 = scalar_lea.vmem [#allocation14], %s537
        %v540 = vld [vmem:[%s472] sm:$0xf]
        %v541 = vld [vmem:[#allocation5] sm:$0xf]
        %v542 = vld [vmem:[#allocation5 + $0x4] sm:$0xf]
        %v543 = vld [vmem:[%s2] sm:$0x1]
        %v545 = vlaneseq
        %v546 = vshrl.u32 %v545, 7
        %v547 = vsub.s32 0, %v546
        %v548 = vrot.slane %v543, %v547
        %v552 = vunpack.c.l.b16 %v541
        %v553 = vunpack.c.l.b16 %v542
        %v554 = vpack.c.b16 %v553, %v552
        %vm556 = vcmask 130048
        %v558 = vsel %vm556, %v540, 0
        %560 = vmatprep.subr.bf16.mxu0 0
        %561 = vmatpush1.bf16.msra.mxu0 %v554
        %562 = vmatprep.subr.bf16.mxu0 0
        %563 = vmatpush1.bf16.msra.mxu0 0
        %564 = vmatprep.subr.bf16.mxu0 0
        %565 = vmatpush1.bf16.msra.mxu0 0
        %566 = vmatprep.subr.bf16.mxu0 0
        %567 = vmatpush1.bf16.msra.mxu0 0
        %568 = vmatprep.subr.bf16.mxu0 0
        %569 = vmatpush1.bf16.msra.mxu0 0
        %570 = vmatprep.subr.bf16.mxu0 0
        %571 = vmatpush1.bf16.msra.mxu0 0
        %572 = vmatprep.subr.bf16.mxu0 0
        %573 = vmatpush1.bf16.msra.mxu0 0
        %574 = vmatprep.subr.bf16.mxu0 0
        %575 = vmatpush1.bf16.msra.mxu0 0
        %576 = vmatprep.subr.bf16.mxu0 0
        %577 = vmatpush1.bf16.msra.mxu0 0
        %578 = vmatprep.subr.bf16.mxu0 0
        %579 = vmatpush1.bf16.msra.mxu0 0
        %580 = vmatprep.subr.bf16.mxu0 0
        %581 = vmatpush1.bf16.msra.mxu0 0
        %582 = vmatprep.subr.bf16.mxu0 0
        %583 = vmatpush1.bf16.msra.mxu0 0
        %584 = vmatprep.subr.bf16.mxu0 0
        %585 = vmatpush1.bf16.msra.mxu0 0
        %586 = vmatprep.subr.bf16.mxu0 0
        %587 = vmatpush1.bf16.msra.mxu0 0
        %588 = vmatprep.subr.bf16.mxu0 0
        %589 = vmatpush1.bf16.msra.mxu0 0
        %590 = vmatprep.subr.bf16.mxu0 0
        %591 = vmatpush1.bf16.msra.mxu0 0
        %592 = vmatprep.mubr.bf16.mxu0 0
        %593 = vmatmul.mubr.bf16.gmra.mrb[0].mxu0 %v558
        %v594 = vpop.f32.mrb[0].mxu0
        %v595 = vadd.f32 %v548, %v594
        %v596 = vpop.f32.mrb[0].mxu0
        %v597 = vpop.f32.mrb[0].mxu0
        %v598 = vpop.f32.mrb[0].mxu0
        %599 = vdwg.mxu0
        %v600 = vpack.c.bf16 %v595, %v595
        %v601 = vld [vmem:[#allocation7] sm:$0xf]
        %v602 = vld [vmem:[#allocation7 + $0x4] sm:$0xf]
        %v603 = vld [vmem:[#allocation7 + $0x8] sm:$0xf]
        %v604 = vld [vmem:[#allocation7 + $0xc] sm:$0xf]
        %v605 = vld [vmem:[%s6] sm:$0x1]
        %v607 = vlaneseq
        %v608 = vshrl.u32 %v607, 7
        %v609 = vsub.s32 0, %v608
        %v610 = vrot.slane %v605, %v609
        %v616 = vunpack.c.l.b16 %v601
        %v617 = vunpack.c.l.b16 %v602
        %v618 = vunpack.c.l.b16 %v603
        %v619 = vunpack.c.l.b16 %v604
        %v620 = vpack.c.b16 %v617, %v616
        %v621 = vpack.c.b16 %v619, %v618
        %vm624 = vcmask 261120
        %v626 = vsel %vm624, %v600, 0
        %628 = vmatprep.subr.bf16.mxu0 0
        %629 = vmatpush1.bf16.msra.mxu0 %v620
        %630 = vmatprep.subr.bf16.mxu0 0
        %631 = vmatpush1.bf16.msra.mxu0 %v621
        %632 = vmatprep.subr.bf16.mxu0 0
        %633 = vmatpush1.bf16.msra.mxu0 0
        %634 = vmatprep.subr.bf16.mxu0 0
        %635 = vmatpush1.bf16.msra.mxu0 0
        %636 = vmatprep.subr.bf16.mxu0 0
        %637 = vmatpush1.bf16.msra.mxu0 0
        %638 = vmatprep.subr.bf16.mxu0 0
        %639 = vmatpush1.bf16.msra.mxu0 0
        %640 = vmatprep.subr.bf16.mxu0 0
        %641 = vmatpush1.bf16.msra.mxu0 0
        %642 = vmatprep.subr.bf16.mxu0 0
        %643 = vmatpush1.bf16.msra.mxu0 0
        %644 = vmatprep.subr.bf16.mxu0 0
        %645 = vmatpush1.bf16.msra.mxu0 0
        %646 = vmatprep.subr.bf16.mxu0 0
        %647 = vmatpush1.bf16.msra.mxu0 0
        %648 = vmatprep.subr.bf16.mxu0 0
        %649 = vmatpush1.bf16.msra.mxu0 0
        %650 = vmatprep.subr.bf16.mxu0 0
        %651 = vmatpush1.bf16.msra.mxu0 0
        %652 = vmatprep.subr.bf16.mxu0 0
        %653 = vmatpush1.bf16.msra.mxu0 0
        %654 = vmatprep.subr.bf16.mxu0 0
        %655 = vmatpush1.bf16.msra.mxu0 0
        %656 = vmatprep.subr.bf16.mxu0 0
        %657 = vmatpush1.bf16.msra.mxu0 0
        %658 = vmatprep.subr.bf16.mxu0 0
        %659 = vmatpush1.bf16.msra.mxu0 0
        %660 = vmatprep.mubr.bf16.mxu0 0
        %661 = vmatmul.mubr.bf16.gmra.mrb[0].mxu0 %v626
        %v662 = vpop.f32.mrb[0].mxu0
        %v663 = vadd.f32 %v610, %v662
        %v664 = vpop.f32.mrb[0].mxu0
        %v665 = vpop.f32.mrb[0].mxu0
        %v666 = vpop.f32.mrb[0].mxu0
        %667 = vdwg.mxu0
        %v668 = vld [vmem:[#allocation8] sm:$0xf]
        %v669 = vld [vmem:[#allocation8 + $0x4] sm:$0xf]
        %v670 = vld [vmem:[#allocation8 + $0x8] sm:$0xf]
        %v671 = vld [vmem:[#allocation8 + $0xc] sm:$0xf]
        %v672 = vld [vmem:[#allocation10] sm:$0x1]
        %v674 = vlaneseq
        %v675 = vshrl.u32 %v674, 7
        %v676 = vsub.s32 0, %v675
        %v677 = vrot.slane %v672, %v676
        %v683 = vunpack.c.l.b16 %v668
        %v684 = vunpack.c.l.b16 %v669
        %v685 = vunpack.c.l.b16 %v670
        %v686 = vunpack.c.l.b16 %v671
        %v687 = vpack.c.b16 %v684, %v683
        %v688 = vpack.c.b16 %v686, %v685
        %691 = vmatprep.subr.bf16.mxu0 0
        %692 = vmatpush1.bf16.msra.mxu0 %v687
        %693 = vmatprep.subr.bf16.mxu0 0
        %694 = vmatpush1.bf16.msra.mxu0 %v688
        %695 = vmatprep.subr.bf16.mxu0 0
        %696 = vmatpush1.bf16.msra.mxu0 0
        %697 = vmatprep.subr.bf16.mxu0 0
        %698 = vmatpush1.bf16.msra.mxu0 0
        %699 = vmatprep.subr.bf16.mxu0 0
        %700 = vmatpush1.bf16.msra.mxu0 0
        %701 = vmatprep.subr.bf16.mxu0 0
        %702 = vmatpush1.bf16.msra.mxu0 0
        %703 = vmatprep.subr.bf16.mxu0 0
        %704 = vmatpush1.bf16.msra.mxu0 0
        %705 = vmatprep.subr.bf16.mxu0 0
        %706 = vmatpush1.bf16.msra.mxu0 0
        %707 = vmatprep.subr.bf16.mxu0 0
        %708 = vmatpush1.bf16.msra.mxu0 0
        %709 = vmatprep.subr.bf16.mxu0 0
        %710 = vmatpush1.bf16.msra.mxu0 0
        %711 = vmatprep.subr.bf16.mxu0 0
        %712 = vmatpush1.bf16.msra.mxu0 0
        %713 = vmatprep.subr.bf16.mxu0 0
        %714 = vmatpush1.bf16.msra.mxu0 0
        %715 = vmatprep.subr.bf16.mxu0 0
        %716 = vmatpush1.bf16.msra.mxu0 0
        %717 = vmatprep.subr.bf16.mxu0 0
        %718 = vmatpush1.bf16.msra.mxu0 0
        %719 = vmatprep.subr.bf16.mxu0 0
        %720 = vmatpush1.bf16.msra.mxu0 0
        %721 = vmatprep.subr.bf16.mxu0 0
        %722 = vmatpush1.bf16.msra.mxu0 0
        %723 = vmatprep.mubr.bf16.mxu0 0
        %724 = vmatmul.mubr.bf16.gmra.mrb[0].mxu0 %v626
        %v725 = vpop.f32.mrb[0].mxu0
        %v726 = vadd.f32 %v677, %v725
        %v727 = vpop.f32.mrb[0].mxu0
        %v728 = vpop.f32.mrb[0].mxu0
        %v729 = vpop.f32.mrb[0].mxu0
        %730 = vdwg.mxu0
        %v731 = vld [vmem:[%s5] sm:$0xf]
        %v732 = vld [vmem:[%s5 + $0x4] sm:$0xf]
        %v733 = vld [vmem:[%s5 + $0x8] sm:$0xf]
        %v734 = vld [vmem:[%s5 + $0xc] sm:$0xf]
        %v735 = vld [vmem:[#allocation11] sm:$0x1]
        %v737 = vlaneseq
        %v738 = vshrl.u32 %v737, 7
        %v739 = vsub.s32 0, %v738
        %v740 = vrot.slane %v735, %v739
        %v746 = vunpack.c.l.b16 %v731
        %v747 = vunpack.c.l.b16 %v732
        %v748 = vunpack.c.l.b16 %v733
        %v749 = vunpack.c.l.b16 %v734
        %v750 = vpack.c.b16 %v747, %v746
        %v751 = vpack.c.b16 %v749, %v748
        %754 = vmatprep.subr.bf16.mxu0 0
        %755 = vmatpush1.bf16.msra.mxu0 %v750
        %756 = vmatprep.subr.bf16.mxu0 0
        %757 = vmatpush1.bf16.msra.mxu0 %v751
        %758 = vmatprep.subr.bf16.mxu0 0
        %759 = vmatpush1.bf16.msra.mxu0 0
        %760 = vmatprep.subr.bf16.mxu0 0
        %761 = vmatpush1.bf16.msra.mxu0 0
        %762 = vmatprep.subr.bf16.mxu0 0
        %763 = vmatpush1.bf16.msra.mxu0 0
        %764 = vmatprep.subr.bf16.mxu0 0
        %765 = vmatpush1.bf16.msra.mxu0 0
        %766 = vmatprep.subr.bf16.mxu0 0
        %767 = vmatpush1.bf16.msra.mxu0 0
        %768 = vmatprep.subr.bf16.mxu0 0
        %769 = vmatpush1.bf16.msra.mxu0 0
        %770 = vmatprep.subr.bf16.mxu0 0
        %771 = vmatpush1.bf16.msra.mxu0 0
        %772 = vmatprep.subr.bf16.mxu0 0
        %773 = vmatpush1.bf16.msra.mxu0 0
        %774 = vmatprep.subr.bf16.mxu0 0
        %775 = vmatpush1.bf16.msra.mxu0 0
        %776 = vmatprep.subr.bf16.mxu0 0
        %777 = vmatpush1.bf16.msra.mxu0 0
        %778 = vmatprep.subr.bf16.mxu0 0
        %779 = vmatpush1.bf16.msra.mxu0 0
        %780 = vmatprep.subr.bf16.mxu0 0
        %781 = vmatpush1.bf16.msra.mxu0 0
        %782 = vmatprep.subr.bf16.mxu0 0
        %783 = vmatpush1.bf16.msra.mxu0 0
        %784 = vmatprep.subr.bf16.mxu0 0
        %785 = vmatpush1.bf16.msra.mxu0 0
        %786 = vmatprep.mubr.bf16.mxu0 0
        %787 = vmatmul.mubr.bf16.gmra.mrb[0].mxu0 %v626
        %v788 = vpop.f32.mrb[0].mxu0
        %v789 = vadd.f32 %v740, %v788
        %v790 = vpop.f32.mrb[0].mxu0
        %v791 = vpop.f32.mrb[0].mxu0
        %v792 = vpop.f32.mrb[0].mxu0
        %793 = vdwg.mxu0
        %v794 = vpack.c.bf16 %v663, %v663
        %v795 = vpack.c.bf16 %v726, %v726
        %v796 = vpack.c.bf16 %v789, %v789
        %v797 = vld [vmem:[%s9] sm:$0xf]
        %v798 = vld [vmem:[%s9 + $0x4] sm:$0xf]
        %v799 = vld [vmem:[%s9 + $0x8] sm:$0xf]
        %v800 = vld [vmem:[%s9 + $0xc] sm:$0xf]
        %vm801 = vcmask 31744
        %v803 = vsel %vm801, %v794, 0
        %v806 = vsel %vm801, %v795, 0
        %808 = vmatprep.subr.bf16.mxu0 0
        %809 = vmatpush1.bf16.xpose.msra.mxu0 %v806
        %810 = vmatprep.subr.bf16.mxu0 0
        %811 = vmatpush1.bf16.xpose.msra.mxu0 0
        %812 = vmatprep.subr.bf16.mxu0 0
        %813 = vmatpush1.bf16.xpose.msra.mxu0 0
        %814 = vmatprep.subr.bf16.mxu0 0
        %815 = vmatpush1.bf16.xpose.msra.mxu0 0
        %816 = vmatprep.subr.bf16.mxu0 0
        %817 = vmatpush1.bf16.xpose.msra.mxu0 0
        %818 = vmatprep.subr.bf16.mxu0 0
        %819 = vmatpush1.bf16.xpose.msra.mxu0 0
        %820 = vmatprep.subr.bf16.mxu0 0
        %821 = vmatpush1.bf16.xpose.msra.mxu0 0
        %822 = vmatprep.subr.bf16.mxu0 0
        %823 = vmatpush1.bf16.xpose.msra.mxu0 0
        %824 = vmatprep.subr.bf16.mxu0 0
        %825 = vmatpush1.bf16.xpose.msra.mxu0 0
        %826 = vmatprep.subr.bf16.mxu0 0
        %827 = vmatpush1.bf16.xpose.msra.mxu0 0
        %828 = vmatprep.subr.bf16.mxu0 0
        %829 = vmatpush1.bf16.xpose.msra.mxu0 0
        %830 = vmatprep.subr.bf16.mxu0 0
        %831 = vmatpush1.bf16.xpose.msra.mxu0 0
        %832 = vmatprep.subr.bf16.mxu0 0
        %833 = vmatpush1.bf16.xpose.msra.mxu0 0
        %834 = vmatprep.subr.bf16.mxu0 0
        %835 = vmatpush1.bf16.xpose.msra.mxu0 0
        %836 = vmatprep.subr.bf16.mxu0 0
        %837 = vmatpush1.bf16.xpose.msra.mxu0 0
        %838 = vmatprep.subr.bf16.mxu0 0
        %839 = vmatpush1.bf16.xpose.msra.mxu0 0
        %840 = vmatprep.mubr.bf16.mxu0 0
        %841 = vmatmul.mubr.bf16.gmra.mrb[0].mxu0 %v803
        %v842 = vpop.f32.mrb[0].mxu0
        %v843 = vadd.f32 0.0, %v842
        %v844 = vpop.f32.mrb[0].mxu0
        %v845 = vpop.f32.mrb[0].mxu0
        %v846 = vpop.f32.mrb[0].mxu0
        %847 = vdwg.mxu0
        %vm848 = vcmask 64512
        %v849 = vsel %vm848, %v843, -inf
        %850 = vmax.xlane.f32.xlu0 %v849
        %v851 = vpop.xlane.xlu0 %850
        %v852 = vsub.f32 %v843, %v851
        %v853 = vmul.f32 %v852, 1.442695
        %v854 = vpow.pop %v853
        %v855 = vsel %vm848, %v854, 0.0
        %856 = vadd.xlane.f32.xlu0 %v855
        %v857 = vpop.xlane.xlu0 %856
        %v858 = vrcp.pop %v857
        %v859 = vmul.f32 %v854, %v858
        %v860 = vpack.c.bf16 %v859, %v859
        %v862 = vsel %vm848, %v860, 0
        %vm864 = vcmask 1043456
        %v866 = vsel %vm864, %v796, 0
        %868 = vmatprep.subr.bf16.mxu0 0
        %869 = vmatpush1.bf16.msra.mxu0 %v866
        %870 = vmatprep.subr.bf16.mxu0 0
        %871 = vmatpush1.bf16.msra.mxu0 0
        %872 = vmatprep.subr.bf16.mxu0 0
        %873 = vmatpush1.bf16.msra.mxu0 0
        %874 = vmatprep.subr.bf16.mxu0 0
        %875 = vmatpush1.bf16.msra.mxu0 0
        %876 = vmatprep.subr.bf16.mxu0 0
        %877 = vmatpush1.bf16.msra.mxu0 0
        %878 = vmatprep.subr.bf16.mxu0 0
        %879 = vmatpush1.bf16.msra.mxu0 0
        %880 = vmatprep.subr.bf16.mxu0 0
        %881 = vmatpush1.bf16.msra.mxu0 0
        %882 = vmatprep.subr.bf16.mxu0 0
        %883 = vmatpush1.bf16.msra.mxu0 0
        %884 = vmatprep.subr.bf16.mxu0 0
        %885 = vmatpush1.bf16.msra.mxu0 0
        %886 = vmatprep.subr.bf16.mxu0 0
        %887 = vmatpush1.bf16.msra.mxu0 0
        %888 = vmatprep.subr.bf16.mxu0 0
        %889 = vmatpush1.bf16.msra.mxu0 0
        %890 = vmatprep.subr.bf16.mxu0 0
        %891 = vmatpush1.bf16.msra.mxu0 0
        %892 = vmatprep.subr.bf16.mxu0 0
        %893 = vmatpush1.bf16.msra.mxu0 0
        %894 = vmatprep.subr.bf16.mxu0 0
        %895 = vmatpush1.bf16.msra.mxu0 0
        %896 = vmatprep.subr.bf16.mxu0 0
        %897 = vmatpush1.bf16.msra.mxu0 0
        %898 = vmatprep.subr.bf16.mxu0 0
        %899 = vmatpush1.bf16.msra.mxu0 0
        %900 = vmatprep.mubr.bf16.mxu0 0
        %901 = vmatmul.mubr.bf16.gmra.mrb[0].mxu0 %v862
        %v902 = vpop.f32.mrb[0].mxu0
        %v903 = vadd.f32 0.0, %v902
        %v904 = vpop.f32.mrb[0].mxu0
        %v905 = vpop.f32.mrb[0].mxu0
        %v906 = vpop.f32.mrb[0].mxu0
        %907 = vdwg.mxu0
        %v908 = vpack.c.bf16 %v903, %v903
        %910 = vrot.lane.b32.xlu0 %v794, 124
        %v911 = vpop.permute.xlu0 %910
        %913 = vrot.lane.b32.xlu0 %v795, 124
        %v914 = vpop.permute.xlu0 %913
        %v916 = vsel %vm801, %v911, 0
        %v919 = vsel %vm801, %v914, 0
        %921 = vmatprep.subr.bf16.mxu0 0
        %922 = vmatpush1.bf16.xpose.msra.mxu0 %v919
        %923 = vmatprep.subr.bf16.mxu0 0
        %924 = vmatpush1.bf16.xpose.msra.mxu0 0
        %925 = vmatprep.subr.bf16.mxu0 0
        %926 = vmatpush1.bf16.xpose.msra.mxu0 0
        %927 = vmatprep.subr.bf16.mxu0 0
        %928 = vmatpush1.bf16.xpose.msra.mxu0 0
        %929 = vmatprep.subr.bf16.mxu0 0
        %930 = vmatpush1.bf16.xpose.msra.mxu0 0
        %931 = vmatprep.subr.bf16.mxu0 0
        %932 = vmatpush1.bf16.xpose.msra.mxu0 0
        %933 = vmatprep.subr.bf16.mxu0 0
        %934 = vmatpush1.bf16.xpose.msra.mxu0 0
        %935 = vmatprep.subr.bf16.mxu0 0
        %936 = vmatpush1.bf16.xpose.msra.mxu0 0
        %937 = vmatprep.subr.bf16.mxu0 0
        %938 = vmatpush1.bf16.xpose.msra.mxu0 0
        %939 = vmatprep.subr.bf16.mxu0 0
        %940 = vmatpush1.bf16.xpose.msra.mxu0 0
        %941 = vmatprep.subr.bf16.mxu0 0
        %942 = vmatpush1.bf16.xpose.msra.mxu0 0
        %943 = vmatprep.subr.bf16.mxu0 0
        %944 = vmatpush1.bf16.xpose.msra.mxu0 0
        %945 = vmatprep.subr.bf16.mxu0 0
        %946 = vmatpush1.bf16.xpose.msra.mxu0 0
        %947 = vmatprep.subr.bf16.mxu0 0
        %948 = vmatpush1.bf16.xpose.msra.mxu0 0
        %949 = vmatprep.subr.bf16.mxu0 0
        %950 = vmatpush1.bf16.xpose.msra.mxu0 0
        %951 = vmatprep.subr.bf16.mxu0 0
        %952 = vmatpush1.bf16.xpose.msra.mxu0 0
        %953 = vmatprep.mubr.bf16.mxu0 0
        %954 = vmatmul.mubr.bf16.gmra.mrb[0].mxu0 %v916
        %v955 = vpop.f32.mrb[0].mxu0
        %v956 = vadd.f32 0.0, %v955
        %v957 = vpop.f32.mrb[0].mxu0
        %v958 = vpop.f32.mrb[0].mxu0
        %v959 = vpop.f32.mrb[0].mxu0
        %960 = vdwg.mxu0
        %v961 = vsel %vm848, %v956, -inf
        %962 = vmax.xlane.f32.xlu0 %v961
        %v963 = vpop.xlane.xlu0 %962
        %v964 = vsub.f32 %v956, %v963
        %v965 = vmul.f32 %v964, 1.442695
        %v966 = vpow.pop %v965
        %v967 = vsel %vm848, %v966, 0.0
        %968 = vadd.xlane.f32.xlu0 %v967
        %v969 = vpop.xlane.xlu0 %968
        %v970 = vrcp.pop %v969
        %v971 = vmul.f32 %v966, %v970
        %v972 = vpack.c.bf16 %v971, %v971
        %974 = vrot.lane.b32.xlu0 %v796, 124
        %v975 = vpop.permute.xlu0 %974
        %v977 = vsel %vm848, %v972, 0
        %v980 = vsel %vm864, %v975, 0
        %982 = vmatprep.subr.bf16.mxu0 0
        %983 = vmatpush1.bf16.msra.mxu0 %v980
        %984 = vmatprep.subr.bf16.mxu0 0
        %985 = vmatpush1.bf16.msra.mxu0 0
        %986 = vmatprep.subr.bf16.mxu0 0
        %987 = vmatpush1.bf16.msra.mxu0 0
        %988 = vmatprep.subr.bf16.mxu0 0
        %989 = vmatpush1.bf16.msra.mxu0 0
        %990 = vmatprep.subr.bf16.mxu0 0
        %991 = vmatpush1.bf16.msra.mxu0 0
        %992 = vmatprep.subr.bf16.mxu0 0
        %993 = vmatpush1.bf16.msra.mxu0 0
        %994 = vmatprep.subr.bf16.mxu0 0
        %995 = vmatpush1.bf16.msra.mxu0 0
        %996 = vmatprep.subr.bf16.mxu0 0
        %997 = vmatpush1.bf16.msra.mxu0 0
        %998 = vmatprep.subr.bf16.mxu0 0
        %999 = vmatpush1.bf16.msra.mxu0 0
        %1000 = vmatprep.subr.bf16.mxu0 0
        %1001 = vmatpush1.bf16.msra.mxu0 0
        %1002 = vmatprep.subr.bf16.mxu0 0
        %1003 = vmatpush1.bf16.msra.mxu0 0
        %1004 = vmatprep.subr.bf16.mxu0 0
        %1005 = vmatpush1.bf16.msra.mxu0 0
        %1006 = vmatprep.subr.bf16.mxu0 0
        %1007 = vmatpush1.bf16.msra.mxu0 0
        %1008 = vmatprep.subr.bf16.mxu0 0
        %1009 = vmatpush1.bf16.msra.mxu0 0
        %1010 = vmatprep.subr.bf16.mxu0 0
        %1011 = vmatpush1.bf16.msra.mxu0 0
        %1012 = vmatprep.subr.bf16.mxu0 0
        %1013 = vmatpush1.bf16.msra.mxu0 0
        %1014 = vmatprep.mubr.bf16.mxu0 0
        %1015 = vmatmul.mubr.bf16.gmra.mrb[0].mxu0 %v977
        %v1016 = vpop.f32.mrb[0].mxu0
        %v1017 = vadd.f32 0.0, %v1016
        %v1018 = vpop.f32.mrb[0].mxu0
        %v1019 = vpop.f32.mrb[0].mxu0
        %v1020 = vpop.f32.mrb[0].mxu0
        %1021 = vdwg.mxu0
        %v1022 = vpack.c.bf16 %v1017, %v1017
        %v1024 = vunpack.c.l.b16 %v797
        %v1025 = vpack.c.b16 %v1024, %v1024
        %v1026 = vrot.slane %v1025, 2
        %v1028 = vsel %vm801, %v1022, 0
        %vm1030 = vcmask 1041408
        %v1032 = vsel %vm1030, %v1026, 0
        %1034 = vmatprep.subr.bf16.mxu0 0
        %1035 = vmatpush1.bf16.msra.mxu0 %v1032
        %1036 = vmatprep.subr.bf16.mxu0 0
        %1037 = vmatpush1.bf16.msra.mxu0 0
        %1038 = vmatprep.subr.bf16.mxu0 0
        %1039 = vmatpush1.bf16.msra.mxu0 0
        %1040 = vmatprep.subr.bf16.mxu0 0
        %1041 = vmatpush1.bf16.msra.mxu0 0
        %1042 = vmatprep.subr.bf16.mxu0 0
        %1043 = vmatpush1.bf16.msra.mxu0 0
        %1044 = vmatprep.subr.bf16.mxu0 0
        %1045 = vmatpush1.bf16.msra.mxu0 0
        %1046 = vmatprep.subr.bf16.mxu0 0
        %1047 = vmatpush1.bf16.msra.mxu0 0
        %1048 = vmatprep.subr.bf16.mxu0 0
        %1049 = vmatpush1.bf16.msra.mxu0 0
        %1050 = vmatprep.subr.bf16.mxu0 0
        %1051 = vmatpush1.bf16.msra.mxu0 0
        %1052 = vmatprep.subr.bf16.mxu0 0
        %1053 = vmatpush1.bf16.msra.mxu0 0
        %1054 = vmatprep.subr.bf16.mxu0 0
        %1055 = vmatpush1.bf16.msra.mxu0 0
        %1056 = vmatprep.subr.bf16.mxu0 0
        %1057 = vmatpush1.bf16.msra.mxu0 0
        %1058 = vmatprep.subr.bf16.mxu0 0
        %1059 = vmatpush1.bf16.msra.mxu0 0
        %1060 = vmatprep.subr.bf16.mxu0 0
        %1061 = vmatpush1.bf16.msra.mxu0 0
        %1062 = vmatprep.subr.bf16.mxu0 0
        %1063 = vmatpush1.bf16.msra.mxu0 0
        %1064 = vmatprep.subr.bf16.mxu0 0
        %1065 = vmatpush1.bf16.msra.mxu0 0
        %1066 = vmatprep.mubr.bf16.mxu0 0
        %1067 = vmatmul.mubr.bf16.gmra.mrb[0].mxu0 %v1028
        %v1068 = vpop.f32.mrb[0].mxu0
        %v1069 = vadd.f32 0.0, %v1068
        %v1070 = vpop.f32.mrb[0].mxu0
        %v1071 = vpop.f32.mrb[0].mxu0
        %v1072 = vpop.f32.mrb[0].mxu0
        %1073 = vdwg.mxu0
        %v1075 = vsel %vm801, %v908, 0
        %v1078 = vsel %vm1030, %v797, 0
        %1080 = vmatprep.subr.bf16.mxu0 0
        %1081 = vmatpush1.bf16.msra.mxu0 %v1078
        %1082 = vmatprep.subr.bf16.mxu0 0
        %1083 = vmatpush1.bf16.msra.mxu0 0
        %1084 = vmatprep.subr.bf16.mxu0 0
        %1085 = vmatpush1.bf16.msra.mxu0 0
        %1086 = vmatprep.subr.bf16.mxu0 0
        %1087 = vmatpush1.bf16.msra.mxu0 0
        %1088 = vmatprep.subr.bf16.mxu0 0
        %1089 = vmatpush1.bf16.msra.mxu0 0
        %1090 = vmatprep.subr.bf16.mxu0 0
        %1091 = vmatpush1.bf16.msra.mxu0 0
        %1092 = vmatprep.subr.bf16.mxu0 0
        %1093 = vmatpush1.bf16.msra.mxu0 0
        %1094 = vmatprep.subr.bf16.mxu0 0
        %1095 = vmatpush1.bf16.msra.mxu0 0
        %1096 = vmatprep.subr.bf16.mxu0 0
        %1097 = vmatpush1.bf16.msra.mxu0 0
        %1098 = vmatprep.subr.bf16.mxu0 0
        %1099 = vmatpush1.bf16.msra.mxu0 0
        %1100 = vmatprep.subr.bf16.mxu0 0
        %1101 = vmatpush1.bf16.msra.mxu0 0
        %1102 = vmatprep.subr.bf16.mxu0 0
        %1103 = vmatpush1.bf16.msra.mxu0 0
        %1104 = vmatprep.subr.bf16.mxu0 0
        %1105 = vmatpush1.bf16.msra.mxu0 0
        %1106 = vmatprep.subr.bf16.mxu0 0
        %1107 = vmatpush1.bf16.msra.mxu0 0
        %1108 = vmatprep.subr.bf16.mxu0 0
        %1109 = vmatpush1.bf16.msra.mxu0 0
        %1110 = vmatprep.subr.bf16.mxu0 0
        %1111 = vmatpush1.bf16.msra.mxu0 0
        %1112 = vmatprep.mubr.bf16.mxu0 0
        %1113 = vmatmul.mubr.bf16.gmra.mrb[0].mxu0 %v1075
        %v1114 = vpop.f32.mrb[0].mxu0
        %v1115 = vadd.f32 %v1069, %v1114
        %v1116 = vpop.f32.mrb[0].mxu0
        %v1117 = vpop.f32.mrb[0].mxu0
        %v1118 = vpop.f32.mrb[0].mxu0
        %1119 = vdwg.mxu0
        %1120 = vrot.lane.b32.xlu0 %v794, 120
        %v1121 = vpop.permute.xlu0 %1120
        %1122 = vrot.lane.b32.xlu0 %v795, 120
        %v1123 = vpop.permute.xlu0 %1122
        %v1125 = vsel %vm801, %v1121, 0
        %v1128 = vsel %vm801, %v1123, 0
        %1130 = vmatprep.subr.bf16.mxu0 0
        %1131 = vmatpush1.bf16.xpose.msra.mxu0 %v1128
        %1132 = vmatprep.subr.bf16.mxu0 0
        %1133 = vmatpush1.bf16.xpose.msra.mxu0 0
        %1134 = vmatprep.subr.bf16.mxu0 0
        %1135 = vmatpush1.bf16.xpose.msra.mxu0 0
        %1136 = vmatprep.subr.bf16.mxu0 0
        %1137 = vmatpush1.bf16.xpose.msra.mxu0 0
        %1138 = vmatprep.subr.bf16.mxu0 0
        %1139 = vmatpush1.bf16.xpose.msra.mxu0 0
        %1140 = vmatprep.subr.bf16.mxu0 0
        %1141 = vmatpush1.bf16.xpose.msra.mxu0 0
        %1142 = vmatprep.subr.bf16.mxu0 0
        %1143 = vmatpush1.bf16.xpose.msra.mxu0 0
        %1144 = vmatprep.subr.bf16.mxu0 0
        %1145 = vmatpush1.bf16.xpose.msra.mxu0 0
        %1146 = vmatprep.subr.bf16.mxu0 0
        %1147 = vmatpush1.bf16.xpose.msra.mxu0 0
        %1148 = vmatprep.subr.bf16.mxu0 0
        %1149 = vmatpush1.bf16.xpose.msra.mxu0 0
        %1150 = vmatprep.subr.bf16.mxu0 0
        %1151 = vmatpush1.bf16.xpose.msra.mxu0 0
        %1152 = vmatprep.subr.bf16.mxu0 0
        %1153 = vmatpush1.bf16.xpose.msra.mxu0 0
        %1154 = vmatprep.subr.bf16.mxu0 0
        %1155 = vmatpush1.bf16.xpose.msra.mxu0 0
        %1156 = vmatprep.subr.bf16.mxu0 0
        %1157 = vmatpush1.bf16.xpose.msra.mxu0 0
        %1158 = vmatprep.subr.bf16.mxu0 0
        %1159 = vmatpush1.bf16.xpose.msra.mxu0 0
        %1160 = vmatprep.subr.bf16.mxu0 0
        %1161 = vmatpush1.bf16.xpose.msra.mxu0 0
        %1162 = vmatprep.mubr.bf16.mxu0 0
        %1163 = vmatmul.mubr.bf16.gmra.mrb[0].mxu0 %v1125
        %v1164 = vpop.f32.mrb[0].mxu0
        %v1165 = vadd.f32 0.0, %v1164
        %v1166 = vpop.f32.mrb[0].mxu0
        %v1167 = vpop.f32.mrb[0].mxu0
        %v1168 = vpop.f32.mrb[0].mxu0
        %1169 = vdwg.mxu0
        %v1170 = vsel %vm848, %v1165, -inf
        %1171 = vmax.xlane.f32.xlu0 %v1170
        %v1172 = vpop.xlane.xlu0 %1171
        %v1173 = vsub.f32 %v1165, %v1172
        %v1174 = vmul.f32 %v1173, 1.442695
        %v1175 = vpow.pop %v1174
        %v1176 = vsel %vm848, %v1175, 0.0
        %1177 = vadd.xlane.f32.xlu0 %v1176
        %v1178 = vpop.xlane.xlu0 %1177
        %v1179 = vrcp.pop %v1178
        %v1180 = vmul.f32 %v1175, %v1179
        %v1181 = vpack.c.bf16 %v1180, %v1180
        %1182 = vrot.lane.b32.xlu0 %v796, 120
        %v1183 = vpop.permute.xlu0 %1182
        %v1185 = vsel %vm848, %v1181, 0
        %v1188 = vsel %vm864, %v1183, 0
        %1190 = vmatprep.subr.bf16.mxu0 0
        %1191 = vmatpush1.bf16.msra.mxu0 %v1188
        %1192 = vmatprep.subr.bf16.mxu0 0
        %1193 = vmatpush1.bf16.msra.mxu0 0
        %1194 = vmatprep.subr.bf16.mxu0 0
        %1195 = vmatpush1.bf16.msra.mxu0 0
        %1196 = vmatprep.subr.bf16.mxu0 0
        %1197 = vmatpush1.bf16.msra.mxu0 0
        %1198 = vmatprep.subr.bf16.mxu0 0
        %1199 = vmatpush1.bf16.msra.mxu0 0
        %1200 = vmatprep.subr.bf16.mxu0 0
        %1201 = vmatpush1.bf16.msra.mxu0 0
        %1202 = vmatprep.subr.bf16.mxu0 0
        %1203 = vmatpush1.bf16.msra.mxu0 0
        %1204 = vmatprep.subr.bf16.mxu0 0
        %1205 = vmatpush1.bf16.msra.mxu0 0
        %1206 = vmatprep.subr.bf16.mxu0 0
        %1207 = vmatpush1.bf16.msra.mxu0 0
        %1208 = vmatprep.subr.bf16.mxu0 0
        %1209 = vmatpush1.bf16.msra.mxu0 0
        %1210 = vmatprep.subr.bf16.mxu0 0
        %1211 = vmatpush1.bf16.msra.mxu0 0
        %1212 = vmatprep.subr.bf16.mxu0 0
        %1213 = vmatpush1.bf16.msra.mxu0 0
        %1214 = vmatprep.subr.bf16.mxu0 0
        %1215 = vmatpush1.bf16.msra.mxu0 0
        %1216 = vmatprep.subr.bf16.mxu0 0
        %1217 = vmatpush1.bf16.msra.mxu0 0
        %1218 = vmatprep.subr.bf16.mxu0 0
        %1219 = vmatpush1.bf16.msra.mxu0 0
        %1220 = vmatprep.subr.bf16.mxu0 0
        %1221 = vmatpush1.bf16.msra.mxu0 0
        %1222 = vmatprep.mubr.bf16.mxu0 0
        %1223 = vmatmul.mubr.bf16.gmra.mrb[0].mxu0 %v1185
        %v1224 = vpop.f32.mrb[0].mxu0
        %v1225 = vadd.f32 0.0, %v1224
        %v1226 = vpop.f32.mrb[0].mxu0
        %v1227 = vpop.f32.mrb[0].mxu0
        %v1228 = vpop.f32.mrb[0].mxu0
        %1229 = vdwg.mxu0
        %v1230 = vpack.c.bf16 %v1225, %v1225
        %v1232 = vsel %vm801, %v1230, 0
        %v1235 = vsel %vm1030, %v798, 0
        %1237 = vmatprep.subr.bf16.mxu0 0
        %1238 = vmatpush1.bf16.msra.mxu0 %v1235
        %1239 = vmatprep.subr.bf16.mxu0 0
        %1240 = vmatpush1.bf16.msra.mxu0 0
        %1241 = vmatprep.subr.bf16.mxu0 0
        %1242 = vmatpush1.bf16.msra.mxu0 0
        %1243 = vmatprep.subr.bf16.mxu0 0
        %1244 = vmatpush1.bf16.msra.mxu0 0
        %1245 = vmatprep.subr.bf16.mxu0 0
        %1246 = vmatpush1.bf16.msra.mxu0 0
        %1247 = vmatprep.subr.bf16.mxu0 0
        %1248 = vmatpush1.bf16.msra.mxu0 0
        %1249 = vmatprep.subr.bf16.mxu0 0
        %1250 = vmatpush1.bf16.msra.mxu0 0
        %1251 = vmatprep.subr.bf16.mxu0 0
        %1252 = vmatpush1.bf16.msra.mxu0 0
        %1253 = vmatprep.subr.bf16.mxu0 0
        %1254 = vmatpush1.bf16.msra.mxu0 0
        %1255 = vmatprep.subr.bf16.mxu0 0
        %1256 = vmatpush1.bf16.msra.mxu0 0
        %1257 = vmatprep.subr.bf16.mxu0 0
        %1258 = vmatpush1.bf16.msra.mxu0 0
        %1259 = vmatprep.subr.bf16.mxu0 0
        %1260 = vmatpush1.bf16.msra.mxu0 0
        %1261 = vmatprep.subr.bf16.mxu0 0
        %1262 = vmatpush1.bf16.msra.mxu0 0
        %1263 = vmatprep.subr.bf16.mxu0 0
        %1264 = vmatpush1.bf16.msra.mxu0 0
        %1265 = vmatprep.subr.bf16.mxu0 0
        %1266 = vmatpush1.bf16.msra.mxu0 0
        %1267 = vmatprep.subr.bf16.mxu0 0
        %1268 = vmatpush1.bf16.msra.mxu0 0
        %1269 = vmatprep.mubr.bf16.mxu0 0
        %1270 = vmatmul.mubr.bf16.gmra.mrb[0].mxu0 %v1232
        %v1271 = vpop.f32.mrb[0].mxu0
        %v1272 = vadd.f32 0.0, %v1271
        %v1273 = vpop.f32.mrb[0].mxu0
        %v1274 = vpop.f32.mrb[0].mxu0
        %v1275 = vpop.f32.mrb[0].mxu0
        %1276 = vdwg.mxu0
        %v1277 = vadd.f32 %v1115, %v1272
        %1278 = vrot.lane.b32.xlu0 %v794, 116
        %v1279 = vpop.permute.xlu0 %1278
        %1280 = vrot.lane.b32.xlu0 %v795, 116
        %v1281 = vpop.permute.xlu0 %1280
        %v1283 = vsel %vm801, %v1279, 0
        %v1286 = vsel %vm801, %v1281, 0
        %1288 = vmatprep.subr.bf16.mxu0 0
        %1289 = vmatpush1.bf16.xpose.msra.mxu0 %v1286
        %1290 = vmatprep.subr.bf16.mxu0 0
        %1291 = vmatpush1.bf16.xpose.msra.mxu0 0
        %1292 = vmatprep.subr.bf16.mxu0 0
        %1293 = vmatpush1.bf16.xpose.msra.mxu0 0
        %1294 = vmatprep.subr.bf16.mxu0 0
        %1295 = vmatpush1.bf16.xpose.msra.mxu0 0
        %1296 = vmatprep.subr.bf16.mxu0 0
        %1297 = vmatpush1.bf16.xpose.msra.mxu0 0
        %1298 = vmatprep.subr.bf16.mxu0 0
        %1299 = vmatpush1.bf16.xpose.msra.mxu0 0
        %1300 = vmatprep.subr.bf16.mxu0 0
        %1301 = vmatpush1.bf16.xpose.msra.mxu0 0
        %1302 = vmatprep.subr.bf16.mxu0 0
        %1303 = vmatpush1.bf16.xpose.msra.mxu0 0
        %1304 = vmatprep.subr.bf16.mxu0 0
        %1305 = vmatpush1.bf16.xpose.msra.mxu0 0
        %1306 = vmatprep.subr.bf16.mxu0 0
        %1307 = vmatpush1.bf16.xpose.msra.mxu0 0
        %1308 = vmatprep.subr.bf16.mxu0 0
        %1309 = vmatpush1.bf16.xpose.msra.mxu0 0
        %1310 = vmatprep.subr.bf16.mxu0 0
        %1311 = vmatpush1.bf16.xpose.msra.mxu0 0
        %1312 = vmatprep.subr.bf16.mxu0 0
        %1313 = vmatpush1.bf16.xpose.msra.mxu0 0
        %1314 = vmatprep.subr.bf16.mxu0 0
        %1315 = vmatpush1.bf16.xpose.msra.mxu0 0
        %1316 = vmatprep.subr.bf16.mxu0 0
        %1317 = vmatpush1.bf16.xpose.msra.mxu0 0
        %1318 = vmatprep.subr.bf16.mxu0 0
        %1319 = vmatpush1.bf16.xpose.msra.mxu0 0
        %1320 = vmatprep.mubr.bf16.mxu0 0
        %1321 = vmatmul.mubr.bf16.gmra.mrb[0].mxu0 %v1283
        %v1322 = vpop.f32.mrb[0].mxu0
        %v1323 = vadd.f32 0.0, %v1322
        %v1324 = vpop.f32.mrb[0].mxu0
        %v1325 = vpop.f32.mrb[0].mxu0
        %v1326 = vpop.f32.mrb[0].mxu0
        %1327 = vdwg.mxu0
        %v1328 = vsel %vm848, %v1323, -inf
        %1329 = vmax.xlane.f32.xlu0 %v1328
        %v1330 = vpop.xlane.xlu0 %1329
        %v1331 = vsub.f32 %v1323, %v1330
        %v1332 = vmul.f32 %v1331, 1.442695
        %v1333 = vpow.pop %v1332
        %v1334 = vsel %vm848, %v1333, 0.0
        %1335 = vadd.xlane.f32.xlu0 %v1334
        %v1336 = vpop.xlane.xlu0 %1335
        %v1337 = vrcp.pop %v1336
        %v1338 = vmul.f32 %v1333, %v1337
        %v1339 = vpack.c.bf16 %v1338, %v1338
        %1340 = vrot.lane.b32.xlu0 %v796, 116
        %v1341 = vpop.permute.xlu0 %1340
        %v1343 = vsel %vm848, %v1339, 0
        %v1346 = vsel %vm864, %v1341, 0
        %1348 = vmatprep.subr.bf16.mxu0 0
        %1349 = vmatpush1.bf16.msra.mxu0 %v1346
        %1350 = vmatprep.subr.bf16.mxu0 0
        %1351 = vmatpush1.bf16.msra.mxu0 0
        %1352 = vmatprep.subr.bf16.mxu0 0
        %1353 = vmatpush1.bf16.msra.mxu0 0
        %1354 = vmatprep.subr.bf16.mxu0 0
        %1355 = vmatpush1.bf16.msra.mxu0 0
        %1356 = vmatprep.subr.bf16.mxu0 0
        %1357 = vmatpush1.bf16.msra.mxu0 0
        %1358 = vmatprep.subr.bf16.mxu0 0
        %1359 = vmatpush1.bf16.msra.mxu0 0
        %1360 = vmatprep.subr.bf16.mxu0 0
        %1361 = vmatpush1.bf16.msra.mxu0 0
        %1362 = vmatprep.subr.bf16.mxu0 0
        %1363 = vmatpush1.bf16.msra.mxu0 0
        %1364 = vmatprep.subr.bf16.mxu0 0
        %1365 = vmatpush1.bf16.msra.mxu0 0
        %1366 = vmatprep.subr.bf16.mxu0 0
        %1367 = vmatpush1.bf16.msra.mxu0 0
        %1368 = vmatprep.subr.bf16.mxu0 0
        %1369 = vmatpush1.bf16.msra.mxu0 0
        %1370 = vmatprep.subr.bf16.mxu0 0
        %1371 = vmatpush1.bf16.msra.mxu0 0
        %1372 = vmatprep.subr.bf16.mxu0 0
        %1373 = vmatpush1.bf16.msra.mxu0 0
        %1374 = vmatprep.subr.bf16.mxu0 0
        %1375 = vmatpush1.bf16.msra.mxu0 0
        %1376 = vmatprep.subr.bf16.mxu0 0
        %1377 = vmatpush1.bf16.msra.mxu0 0
        %1378 = vmatprep.subr.bf16.mxu0 0
        %1379 = vmatpush1.bf16.msra.mxu0 0
        %1380 = vmatprep.mubr.bf16.mxu0 0
        %1381 = vmatmul.mubr.bf16.gmra.mrb[0].mxu0 %v1343
        %v1382 = vpop.f32.mrb[0].mxu0
        %v1383 = vadd.f32 0.0, %v1382
        %v1384 = vpop.f32.mrb[0].mxu0
        %v1385 = vpop.f32.mrb[0].mxu0
        %v1386 = vpop.f32.mrb[0].mxu0
        %1387 = vdwg.mxu0
        %v1388 = vpack.c.bf16 %v1383, %v1383
        %v1390 = vunpack.c.l.b16 %v798
        %v1391 = vpack.c.b16 %v1390, %v1390
        %v1392 = vrot.slane %v1391, 2
        %v1394 = vsel %vm801, %v1388, 0
        %v1397 = vsel %vm1030, %v1392, 0
        %1399 = vmatprep.subr.bf16.mxu0 0
        %1400 = vmatpush1.bf16.msra.mxu0 %v1397
        %1401 = vmatprep.subr.bf16.mxu0 0
        %1402 = vmatpush1.bf16.msra.mxu0 0
        %1403 = vmatprep.subr.bf16.mxu0 0
        %1404 = vmatpush1.bf16.msra.mxu0 0
        %1405 = vmatprep.subr.bf16.mxu0 0
        %1406 = vmatpush1.bf16.msra.mxu0 0
        %1407 = vmatprep.subr.bf16.mxu0 0
        %1408 = vmatpush1.bf16.msra.mxu0 0
        %1409 = vmatprep.subr.bf16.mxu0 0
        %1410 = vmatpush1.bf16.msra.mxu0 0
        %1411 = vmatprep.subr.bf16.mxu0 0
        %1412 = vmatpush1.bf16.msra.mxu0 0
        %1413 = vmatprep.subr.bf16.mxu0 0
        %1414 = vmatpush1.bf16.msra.mxu0 0
        %1415 = vmatprep.subr.bf16.mxu0 0
        %1416 = vmatpush1.bf16.msra.mxu0 0
        %1417 = vmatprep.subr.bf16.mxu0 0
        %1418 = vmatpush1.bf16.msra.mxu0 0
        %1419 = vmatprep.subr.bf16.mxu0 0
        %1420 = vmatpush1.bf16.msra.mxu0 0
        %1421 = vmatprep.subr.bf16.mxu0 0
        %1422 = vmatpush1.bf16.msra.mxu0 0
        %1423 = vmatprep.subr.bf16.mxu0 0
        %1424 = vmatpush1.bf16.msra.mxu0 0
        %1425 = vmatprep.subr.bf16.mxu0 0
        %1426 = vmatpush1.bf16.msra.mxu0 0
        %1427 = vmatprep.subr.bf16.mxu0 0
        %1428 = vmatpush1.bf16.msra.mxu0 0
        %1429 = vmatprep.subr.bf16.mxu0 0
        %1430 = vmatpush1.bf16.msra.mxu0 0
        %1431 = vmatprep.mubr.bf16.mxu0 0
        %1432 = vmatmul.mubr.bf16.gmra.mrb[0].mxu0 %v1394
        %v1433 = vpop.f32.mrb[0].mxu0
        %v1434 = vadd.f32 0.0, %v1433
        %v1435 = vpop.f32.mrb[0].mxu0
        %v1436 = vpop.f32.mrb[0].mxu0
        %v1437 = vpop.f32.mrb[0].mxu0
        %1438 = vdwg.mxu0
        %v1439 = vadd.f32 %v1277, %v1434
        %1440 = vrot.lane.b32.xlu0 %v794, 112
        %v1441 = vpop.permute.xlu0 %1440
        %1442 = vrot.lane.b32.xlu0 %v795, 112
        %v1443 = vpop.permute.xlu0 %1442
        %v1445 = vsel %vm801, %v1441, 0
        %v1448 = vsel %vm801, %v1443, 0
        %1450 = vmatprep.subr.bf16.mxu0 0
        %1451 = vmatpush1.bf16.xpose.msra.mxu0 %v1448
        %1452 = vmatprep.subr.bf16.mxu0 0
        %1453 = vmatpush1.bf16.xpose.msra.mxu0 0
        %1454 = vmatprep.subr.bf16.mxu0 0
        %1455 = vmatpush1.bf16.xpose.msra.mxu0 0
        %1456 = vmatprep.subr.bf16.mxu0 0
        %1457 = vmatpush1.bf16.xpose.msra.mxu0 0
        %1458 = vmatprep.subr.bf16.mxu0 0
        %1459 = vmatpush1.bf16.xpose.msra.mxu0 0
        %1460 = vmatprep.subr.bf16.mxu0 0
        %1461 = vmatpush1.bf16.xpose.msra.mxu0 0
        %1462 = vmatprep.subr.bf16.mxu0 0
        %1463 = vmatpush1.bf16.xpose.msra.mxu0 0
        %1464 = vmatprep.subr.bf16.mxu0 0
        %1465 = vmatpush1.bf16.xpose.msra.mxu0 0
        %1466 = vmatprep.subr.bf16.mxu0 0
        %1467 = vmatpush1.bf16.xpose.msra.mxu0 0
        %1468 = vmatprep.subr.bf16.mxu0 0
        %1469 = vmatpush1.bf16.xpose.msra.mxu0 0
        %1470 = vmatprep.subr.bf16.mxu0 0
        %1471 = vmatpush1.bf16.xpose.msra.mxu0 0
        %1472 = vmatprep.subr.bf16.mxu0 0
        %1473 = vmatpush1.bf16.xpose.msra.mxu0 0
        %1474 = vmatprep.subr.bf16.mxu0 0
        %1475 = vmatpush1.bf16.xpose.msra.mxu0 0
        %1476 = vmatprep.subr.bf16.mxu0 0
        %1477 = vmatpush1.bf16.xpose.msra.mxu0 0
        %1478 = vmatprep.subr.bf16.mxu0 0
        %1479 = vmatpush1.bf16.xpose.msra.mxu0 0
        %1480 = vmatprep.subr.bf16.mxu0 0
        %1481 = vmatpush1.bf16.xpose.msra.mxu0 0
        %1482 = vmatprep.mubr.bf16.mxu0 0
        %1483 = vmatmul.mubr.bf16.gmra.mrb[0].mxu0 %v1445
        %v1484 = vpop.f32.mrb[0].mxu0
        %v1485 = vadd.f32 0.0, %v1484
        %v1486 = vpop.f32.mrb[0].mxu0
        %v1487 = vpop.f32.mrb[0].mxu0
        %v1488 = vpop.f32.mrb[0].mxu0
        %1489 = vdwg.mxu0
        %v1490 = vsel %vm848, %v1485, -inf
        %1491 = vmax.xlane.f32.xlu0 %v1490
        %v1492 = vpop.xlane.xlu0 %1491
        %v1493 = vsub.f32 %v1485, %v1492
        %v1494 = vmul.f32 %v1493, 1.442695
        %v1495 = vpow.pop %v1494
        %v1496 = vsel %vm848, %v1495, 0.0
        %1497 = vadd.xlane.f32.xlu0 %v1496
        %v1498 = vpop.xlane.xlu0 %1497
        %v1499 = vrcp.pop %v1498
        %v1500 = vmul.f32 %v1495, %v1499
        %v1501 = vpack.c.bf16 %v1500, %v1500
        %1502 = vrot.lane.b32.xlu0 %v796, 112
        %v1503 = vpop.permute.xlu0 %1502
        %v1505 = vsel %vm848, %v1501, 0
        %v1508 = vsel %vm864, %v1503, 0
        %1510 = vmatprep.subr.bf16.mxu0 0
        %1511 = vmatpush1.bf16.msra.mxu0 %v1508
        %1512 = vmatprep.subr.bf16.mxu0 0
        %1513 = vmatpush1.bf16.msra.mxu0 0
        %1514 = vmatprep.subr.bf16.mxu0 0
        %1515 = vmatpush1.bf16.msra.mxu0 0
        %1516 = vmatprep.subr.bf16.mxu0 0
        %1517 = vmatpush1.bf16.msra.mxu0 0
        %1518 = vmatprep.subr.bf16.mxu0 0
        %1519 = vmatpush1.bf16.msra.mxu0 0
        %1520 = vmatprep.subr.bf16.mxu0 0
        %1521 = vmatpush1.bf16.msra.mxu0 0
        %1522 = vmatprep.subr.bf16.mxu0 0
        %1523 = vmatpush1.bf16.msra.mxu0 0
        %1524 = vmatprep.subr.bf16.mxu0 0
        %1525 = vmatpush1.bf16.msra.mxu0 0
        %1526 = vmatprep.subr.bf16.mxu0 0
        %1527 = vmatpush1.bf16.msra.mxu0 0
        %1528 = vmatprep.subr.bf16.mxu0 0
        %1529 = vmatpush1.bf16.msra.mxu0 0
        %1530 = vmatprep.subr.bf16.mxu0 0
        %1531 = vmatpush1.bf16.msra.mxu0 0
        %1532 = vmatprep.subr.bf16.mxu0 0
        %1533 = vmatpush1.bf16.msra.mxu0 0
        %1534 = vmatprep.subr.bf16.mxu0 0
        %1535 = vmatpush1.bf16.msra.mxu0 0
        %1536 = vmatprep.subr.bf16.mxu0 0
        %1537 = vmatpush1.bf16.msra.mxu0 0
        %1538 = vmatprep.subr.bf16.mxu0 0
        %1539 = vmatpush1.bf16.msra.mxu0 0
        %1540 = vmatprep.subr.bf16.mxu0 0
        %1541 = vmatpush1.bf16.msra.mxu0 0
        %1542 = vmatprep.mubr.bf16.mxu0 0
        %1543 = vmatmul.mubr.bf16.gmra.mrb[0].mxu0 %v1505
        %v1544 = vpop.f32.mrb[0].mxu0
        %v1545 = vadd.f32 0.0, %v1544
        %v1546 = vpop.f32.mrb[0].mxu0
        %v1547 = vpop.f32.mrb[0].mxu0
        %v1548 = vpop.f32.mrb[0].mxu0
        %1549 = vdwg.mxu0
        %v1550 = vpack.c.bf16 %v1545, %v1545
        %v1552 = vsel %vm801, %v1550, 0
        %v1555 = vsel %vm1030, %v799, 0
        %1557 = vmatprep.subr.bf16.mxu0 0
        %1558 = vmatpush1.bf16.msra.mxu0 %v1555
        %1559 = vmatprep.subr.bf16.mxu0 0
        %1560 = vmatpush1.bf16.msra.mxu0 0
        %1561 = vmatprep.subr.bf16.mxu0 0
        %1562 = vmatpush1.bf16.msra.mxu0 0
        %1563 = vmatprep.subr.bf16.mxu0 0
        %1564 = vmatpush1.bf16.msra.mxu0 0
        %1565 = vmatprep.subr.bf16.mxu0 0
        %1566 = vmatpush1.bf16.msra.mxu0 0
        %1567 = vmatprep.subr.bf16.mxu0 0
        %1568 = vmatpush1.bf16.msra.mxu0 0
        %1569 = vmatprep.subr.bf16.mxu0 0
        %1570 = vmatpush1.bf16.msra.mxu0 0
        %1571 = vmatprep.subr.bf16.mxu0 0
        %1572 = vmatpush1.bf16.msra.mxu0 0
        %1573 = vmatprep.subr.bf16.mxu0 0
        %1574 = vmatpush1.bf16.msra.mxu0 0
        %1575 = vmatprep.subr.bf16.mxu0 0
        %1576 = vmatpush1.bf16.msra.mxu0 0
        %1577 = vmatprep.subr.bf16.mxu0 0
        %1578 = vmatpush1.bf16.msra.mxu0 0
        %1579 = vmatprep.subr.bf16.mxu0 0
        %1580 = vmatpush1.bf16.msra.mxu0 0
        %1581 = vmatprep.subr.bf16.mxu0 0
        %1582 = vmatpush1.bf16.msra.mxu0 0
        %1583 = vmatprep.subr.bf16.mxu0 0
        %1584 = vmatpush1.bf16.msra.mxu0 0
        %1585 = vmatprep.subr.bf16.mxu0 0
        %1586 = vmatpush1.bf16.msra.mxu0 0
        %1587 = vmatprep.subr.bf16.mxu0 0
        %1588 = vmatpush1.bf16.msra.mxu0 0
        %1589 = vmatprep.mubr.bf16.mxu0 0
        %1590 = vmatmul.mubr.bf16.gmra.mrb[0].mxu0 %v1552
        %v1591 = vpop.f32.mrb[0].mxu0
        %v1592 = vadd.f32 0.0, %v1591
        %v1593 = vpop.f32.mrb[0].mxu0
        %v1594 = vpop.f32.mrb[0].mxu0
        %v1595 = vpop.f32.mrb[0].mxu0
        %1596 = vdwg.mxu0
        %v1597 = vadd.f32 %v1439, %v1592
        %1598 = vrot.lane.b32.xlu0 %v794, 108
        %v1599 = vpop.permute.xlu0 %1598
        %1600 = vrot.lane.b32.xlu0 %v795, 108
        %v1601 = vpop.permute.xlu0 %1600
        %v1603 = vsel %vm801, %v1599, 0
        %v1606 = vsel %vm801, %v1601, 0
        %1608 = vmatprep.subr.bf16.mxu0 0
        %1609 = vmatpush1.bf16.xpose.msra.mxu0 %v1606
        %1610 = vmatprep.subr.bf16.mxu0 0
        %1611 = vmatpush1.bf16.xpose.msra.mxu0 0
        %1612 = vmatprep.subr.bf16.mxu0 0
        %1613 = vmatpush1.bf16.xpose.msra.mxu0 0
        %1614 = vmatprep.subr.bf16.mxu0 0
        %1615 = vmatpush1.bf16.xpose.msra.mxu0 0
        %1616 = vmatprep.subr.bf16.mxu0 0
        %1617 = vmatpush1.bf16.xpose.msra.mxu0 0
        %1618 = vmatprep.subr.bf16.mxu0 0
        %1619 = vmatpush1.bf16.xpose.msra.mxu0 0
        %1620 = vmatprep.subr.bf16.mxu0 0
        %1621 = vmatpush1.bf16.xpose.msra.mxu0 0
        %1622 = vmatprep.subr.bf16.mxu0 0
        %1623 = vmatpush1.bf16.xpose.msra.mxu0 0
        %1624 = vmatprep.subr.bf16.mxu0 0
        %1625 = vmatpush1.bf16.xpose.msra.mxu0 0
        %1626 = vmatprep.subr.bf16.mxu0 0
        %1627 = vmatpush1.bf16.xpose.msra.mxu0 0
        %1628 = vmatprep.subr.bf16.mxu0 0
        %1629 = vmatpush1.bf16.xpose.msra.mxu0 0
        %1630 = vmatprep.subr.bf16.mxu0 0
        %1631 = vmatpush1.bf16.xpose.msra.mxu0 0
        %1632 = vmatprep.subr.bf16.mxu0 0
        %1633 = vmatpush1.bf16.xpose.msra.mxu0 0
        %1634 = vmatprep.subr.bf16.mxu0 0
        %1635 = vmatpush1.bf16.xpose.msra.mxu0 0
        %1636 = vmatprep.subr.bf16.mxu0 0
        %1637 = vmatpush1.bf16.xpose.msra.mxu0 0
        %1638 = vmatprep.subr.bf16.mxu0 0
        %1639 = vmatpush1.bf16.xpose.msra.mxu0 0
        %1640 = vmatprep.mubr.bf16.mxu0 0
        %1641 = vmatmul.mubr.bf16.gmra.mrb[0].mxu0 %v1603
        %v1642 = vpop.f32.mrb[0].mxu0
        %v1643 = vadd.f32 0.0, %v1642
        %v1644 = vpop.f32.mrb[0].mxu0
        %v1645 = vpop.f32.mrb[0].mxu0
        %v1646 = vpop.f32.mrb[0].mxu0
        %1647 = vdwg.mxu0
        %v1648 = vsel %vm848, %v1643, -inf
        %1649 = vmax.xlane.f32.xlu0 %v1648
        %v1650 = vpop.xlane.xlu0 %1649
        %v1651 = vsub.f32 %v1643, %v1650
        %v1652 = vmul.f32 %v1651, 1.442695
        %v1653 = vpow.pop %v1652
        %v1654 = vsel %vm848, %v1653, 0.0
        %1655 = vadd.xlane.f32.xlu0 %v1654
        %v1656 = vpop.xlane.xlu0 %1655
        %v1657 = vrcp.pop %v1656
        %v1658 = vmul.f32 %v1653, %v1657
        %v1659 = vpack.c.bf16 %v1658, %v1658
        %1660 = vrot.lane.b32.xlu0 %v796, 108
        %v1661 = vpop.permute.xlu0 %1660
        %v1663 = vsel %vm848, %v1659, 0
        %v1666 = vsel %vm864, %v1661, 0
        %1668 = vmatprep.subr.bf16.mxu0 0
        %1669 = vmatpush1.bf16.msra.mxu0 %v1666
        %1670 = vmatprep.subr.bf16.mxu0 0
        %1671 = vmatpush1.bf16.msra.mxu0 0
        %1672 = vmatprep.subr.bf16.mxu0 0
        %1673 = vmatpush1.bf16.msra.mxu0 0
        %1674 = vmatprep.subr.bf16.mxu0 0
        %1675 = vmatpush1.bf16.msra.mxu0 0
        %1676 = vmatprep.subr.bf16.mxu0 0
        %1677 = vmatpush1.bf16.msra.mxu0 0
        %1678 = vmatprep.subr.bf16.mxu0 0
        %1679 = vmatpush1.bf16.msra.mxu0 0
        %1680 = vmatprep.subr.bf16.mxu0 0
        %1681 = vmatpush1.bf16.msra.mxu0 0
        %1682 = vmatprep.subr.bf16.mxu0 0
        %1683 = vmatpush1.bf16.msra.mxu0 0
        %1684 = vmatprep.subr.bf16.mxu0 0
        %1685 = vmatpush1.bf16.msra.mxu0 0
        %1686 = vmatprep.subr.bf16.mxu0 0
        %1687 = vmatpush1.bf16.msra.mxu0 0
        %1688 = vmatprep.subr.bf16.mxu0 0
        %1689 = vmatpush1.bf16.msra.mxu0 0
        %1690 = vmatprep.subr.bf16.mxu0 0
        %1691 = vmatpush1.bf16.msra.mxu0 0
        %1692 = vmatprep.subr.bf16.mxu0 0
        %1693 = vmatpush1.bf16.msra.mxu0 0
        %1694 = vmatprep.subr.bf16.mxu0 0
        %1695 = vmatpush1.bf16.msra.mxu0 0
        %1696 = vmatprep.subr.bf16.mxu0 0
        %1697 = vmatpush1.bf16.msra.mxu0 0
        %1698 = vmatprep.subr.bf16.mxu0 0
        %1699 = vmatpush1.bf16.msra.mxu0 0
        %1700 = vmatprep.mubr.bf16.mxu0 0
        %1701 = vmatmul.mubr.bf16.gmra.mrb[0].mxu0 %v1663
        %v1702 = vpop.f32.mrb[0].mxu0
        %v1703 = vadd.f32 0.0, %v1702
        %v1704 = vpop.f32.mrb[0].mxu0
        %v1705 = vpop.f32.mrb[0].mxu0
        %v1706 = vpop.f32.mrb[0].mxu0
        %1707 = vdwg.mxu0
        %v1708 = vpack.c.bf16 %v1703, %v1703
        %v1710 = vunpack.c.l.b16 %v799
        %v1711 = vpack.c.b16 %v1710, %v1710
        %v1712 = vrot.slane %v1711, 2
        %v1714 = vsel %vm801, %v1708, 0
        %v1717 = vsel %vm1030, %v1712, 0
        %1719 = vmatprep.subr.bf16.mxu0 0
        %1720 = vmatpush1.bf16.msra.mxu0 %v1717
        %1721 = vmatprep.subr.bf16.mxu0 0
        %1722 = vmatpush1.bf16.msra.mxu0 0
        %1723 = vmatprep.subr.bf16.mxu0 0
        %1724 = vmatpush1.bf16.msra.mxu0 0
        %1725 = vmatprep.subr.bf16.mxu0 0
        %1726 = vmatpush1.bf16.msra.mxu0 0
        %1727 = vmatprep.subr.bf16.mxu0 0
        %1728 = vmatpush1.bf16.msra.mxu0 0
        %1729 = vmatprep.subr.bf16.mxu0 0
        %1730 = vmatpush1.bf16.msra.mxu0 0
        %1731 = vmatprep.subr.bf16.mxu0 0
        %1732 = vmatpush1.bf16.msra.mxu0 0
        %1733 = vmatprep.subr.bf16.mxu0 0
        %1734 = vmatpush1.bf16.msra.mxu0 0
        %1735 = vmatprep.subr.bf16.mxu0 0
        %1736 = vmatpush1.bf16.msra.mxu0 0
        %1737 = vmatprep.subr.bf16.mxu0 0
        %1738 = vmatpush1.bf16.msra.mxu0 0
        %1739 = vmatprep.subr.bf16.mxu0 0
        %1740 = vmatpush1.bf16.msra.mxu0 0
        %1741 = vmatprep.subr.bf16.mxu0 0
        %1742 = vmatpush1.bf16.msra.mxu0 0
        %1743 = vmatprep.subr.bf16.mxu0 0
        %1744 = vmatpush1.bf16.msra.mxu0 0
        %1745 = vmatprep.subr.bf16.mxu0 0
        %1746 = vmatpush1.bf16.msra.mxu0 0
        %1747 = vmatprep.subr.bf16.mxu0 0
        %1748 = vmatpush1.bf16.msra.mxu0 0
        %1749 = vmatprep.subr.bf16.mxu0 0
        %1750 = vmatpush1.bf16.msra.mxu0 0
        %1751 = vmatprep.mubr.bf16.mxu0 0
        %1752 = vmatmul.mubr.bf16.gmra.mrb[0].mxu0 %v1714
        %v1753 = vpop.f32.mrb[0].mxu0
        %v1754 = vadd.f32 0.0, %v1753
        %v1755 = vpop.f32.mrb[0].mxu0
        %v1756 = vpop.f32.mrb[0].mxu0
        %v1757 = vpop.f32.mrb[0].mxu0
        %1758 = vdwg.mxu0
        %v1759 = vadd.f32 %v1597, %v1754
        %1760 = vrot.lane.b32.xlu0 %v794, 104
        %v1761 = vpop.permute.xlu0 %1760
        %1762 = vrot.lane.b32.xlu0 %v795, 104
        %v1763 = vpop.permute.xlu0 %1762
        %v1765 = vsel %vm801, %v1761, 0
        %v1768 = vsel %vm801, %v1763, 0
        %1770 = vmatprep.subr.bf16.mxu0 0
        %1771 = vmatpush1.bf16.xpose.msra.mxu0 %v1768
        %1772 = vmatprep.subr.bf16.mxu0 0
        %1773 = vmatpush1.bf16.xpose.msra.mxu0 0
        %1774 = vmatprep.subr.bf16.mxu0 0
        %1775 = vmatpush1.bf16.xpose.msra.mxu0 0
        %1776 = vmatprep.subr.bf16.mxu0 0
        %1777 = vmatpush1.bf16.xpose.msra.mxu0 0
        %1778 = vmatprep.subr.bf16.mxu0 0
        %1779 = vmatpush1.bf16.xpose.msra.mxu0 0
        %1780 = vmatprep.subr.bf16.mxu0 0
        %1781 = vmatpush1.bf16.xpose.msra.mxu0 0
        %1782 = vmatprep.subr.bf16.mxu0 0
        %1783 = vmatpush1.bf16.xpose.msra.mxu0 0
        %1784 = vmatprep.subr.bf16.mxu0 0
        %1785 = vmatpush1.bf16.xpose.msra.mxu0 0
        %1786 = vmatprep.subr.bf16.mxu0 0
        %1787 = vmatpush1.bf16.xpose.msra.mxu0 0
        %1788 = vmatprep.subr.bf16.mxu0 0
        %1789 = vmatpush1.bf16.xpose.msra.mxu0 0
        %1790 = vmatprep.subr.bf16.mxu0 0
        %1791 = vmatpush1.bf16.xpose.msra.mxu0 0
        %1792 = vmatprep.subr.bf16.mxu0 0
        %1793 = vmatpush1.bf16.xpose.msra.mxu0 0
        %1794 = vmatprep.subr.bf16.mxu0 0
        %1795 = vmatpush1.bf16.xpose.msra.mxu0 0
        %1796 = vmatprep.subr.bf16.mxu0 0
        %1797 = vmatpush1.bf16.xpose.msra.mxu0 0
        %1798 = vmatprep.subr.bf16.mxu0 0
        %1799 = vmatpush1.bf16.xpose.msra.mxu0 0
        %1800 = vmatprep.subr.bf16.mxu0 0
        %1801 = vmatpush1.bf16.xpose.msra.mxu0 0
        %1802 = vmatprep.mubr.bf16.mxu0 0
        %1803 = vmatmul.mubr.bf16.gmra.mrb[0].mxu0 %v1765
        %v1804 = vpop.f32.mrb[0].mxu0
        %v1805 = vadd.f32 0.0, %v1804
        %v1806 = vpop.f32.mrb[0].mxu0
        %v1807 = vpop.f32.mrb[0].mxu0
        %v1808 = vpop.f32.mrb[0].mxu0
        %1809 = vdwg.mxu0
        %v1810 = vsel %vm848, %v1805, -inf
        %1811 = vmax.xlane.f32.xlu0 %v1810
        %v1812 = vpop.xlane.xlu0 %1811
        %v1813 = vsub.f32 %v1805, %v1812
        %v1814 = vmul.f32 %v1813, 1.442695
        %v1815 = vpow.pop %v1814
        %v1816 = vsel %vm848, %v1815, 0.0
        %1817 = vadd.xlane.f32.xlu0 %v1816
        %v1818 = vpop.xlane.xlu0 %1817
        %v1819 = vrcp.pop %v1818
        %v1820 = vmul.f32 %v1815, %v1819
        %v1821 = vpack.c.bf16 %v1820, %v1820
        %1822 = vrot.lane.b32.xlu0 %v796, 104
        %v1823 = vpop.permute.xlu0 %1822
        %v1825 = vsel %vm848, %v1821, 0
        %v1828 = vsel %vm864, %v1823, 0
        %1830 = vmatprep.subr.bf16.mxu0 0
        %1831 = vmatpush1.bf16.msra.mxu0 %v1828
        %1832 = vmatprep.subr.bf16.mxu0 0
        %1833 = vmatpush1.bf16.msra.mxu0 0
        %1834 = vmatprep.subr.bf16.mxu0 0
        %1835 = vmatpush1.bf16.msra.mxu0 0
        %1836 = vmatprep.subr.bf16.mxu0 0
        %1837 = vmatpush1.bf16.msra.mxu0 0
        %1838 = vmatprep.subr.bf16.mxu0 0
        %1839 = vmatpush1.bf16.msra.mxu0 0
        %1840 = vmatprep.subr.bf16.mxu0 0
        %1841 = vmatpush1.bf16.msra.mxu0 0
        %1842 = vmatprep.subr.bf16.mxu0 0
        %1843 = vmatpush1.bf16.msra.mxu0 0
        %1844 = vmatprep.subr.bf16.mxu0 0
        %1845 = vmatpush1.bf16.msra.mxu0 0
        %1846 = vmatprep.subr.bf16.mxu0 0
        %1847 = vmatpush1.bf16.msra.mxu0 0
        %1848 = vmatprep.subr.bf16.mxu0 0
        %1849 = vmatpush1.bf16.msra.mxu0 0
        %1850 = vmatprep.subr.bf16.mxu0 0
        %1851 = vmatpush1.bf16.msra.mxu0 0
        %1852 = vmatprep.subr.bf16.mxu0 0
        %1853 = vmatpush1.bf16.msra.mxu0 0
        %1854 = vmatprep.subr.bf16.mxu0 0
        %1855 = vmatpush1.bf16.msra.mxu0 0
        %1856 = vmatprep.subr.bf16.mxu0 0
        %1857 = vmatpush1.bf16.msra.mxu0 0
        %1858 = vmatprep.subr.bf16.mxu0 0
        %1859 = vmatpush1.bf16.msra.mxu0 0
        %1860 = vmatprep.subr.bf16.mxu0 0
        %1861 = vmatpush1.bf16.msra.mxu0 0
        %1862 = vmatprep.mubr.bf16.mxu0 0
        %1863 = vmatmul.mubr.bf16.gmra.mrb[0].mxu0 %v1825
        %v1864 = vpop.f32.mrb[0].mxu0
        %v1865 = vadd.f32 0.0, %v1864
        %v1866 = vpop.f32.mrb[0].mxu0
        %v1867 = vpop.f32.mrb[0].mxu0
        %v1868 = vpop.f32.mrb[0].mxu0
        %1869 = vdwg.mxu0
        %v1870 = vpack.c.bf16 %v1865, %v1865
        %v1872 = vsel %vm801, %v1870, 0
        %v1875 = vsel %vm1030, %v800, 0
        %1877 = vmatprep.subr.bf16.mxu0 0
        %1878 = vmatpush1.bf16.msra.mxu0 %v1875
        %1879 = vmatprep.subr.bf16.mxu0 0
        %1880 = vmatpush1.bf16.msra.mxu0 0
        %1881 = vmatprep.subr.bf16.mxu0 0
        %1882 = vmatpush1.bf16.msra.mxu0 0
        %1883 = vmatprep.subr.bf16.mxu0 0
        %1884 = vmatpush1.bf16.msra.mxu0 0
        %1885 = vmatprep.subr.bf16.mxu0 0
        %1886 = vmatpush1.bf16.msra.mxu0 0
        %1887 = vmatprep.subr.bf16.mxu0 0
        %1888 = vmatpush1.bf16.msra.mxu0 0
        %1889 = vmatprep.subr.bf16.mxu0 0
        %1890 = vmatpush1.bf16.msra.mxu0 0
        %1891 = vmatprep.subr.bf16.mxu0 0
        %1892 = vmatpush1.bf16.msra.mxu0 0
        %1893 = vmatprep.subr.bf16.mxu0 0
        %1894 = vmatpush1.bf16.msra.mxu0 0
        %1895 = vmatprep.subr.bf16.mxu0 0
        %1896 = vmatpush1.bf16.msra.mxu0 0
        %1897 = vmatprep.subr.bf16.mxu0 0
        %1898 = vmatpush1.bf16.msra.mxu0 0
        %1899 = vmatprep.subr.bf16.mxu0 0
        %1900 = vmatpush1.bf16.msra.mxu0 0
        %1901 = vmatprep.subr.bf16.mxu0 0
        %1902 = vmatpush1.bf16.msra.mxu0 0
        %1903 = vmatprep.subr.bf16.mxu0 0
        %1904 = vmatpush1.bf16.msra.mxu0 0
        %1905 = vmatprep.subr.bf16.mxu0 0
        %1906 = vmatpush1.bf16.msra.mxu0 0
        %1907 = vmatprep.subr.bf16.mxu0 0
        %1908 = vmatpush1.bf16.msra.mxu0 0
        %1909 = vmatprep.mubr.bf16.mxu0 0
        %1910 = vmatmul.mubr.bf16.gmra.mrb[0].mxu0 %v1872
        %v1911 = vpop.f32.mrb[0].mxu0
        %v1912 = vadd.f32 0.0, %v1911
        %v1913 = vpop.f32.mrb[0].mxu0
        %v1914 = vpop.f32.mrb[0].mxu0
        %v1915 = vpop.f32.mrb[0].mxu0
        %1916 = vdwg.mxu0
        %v1917 = vadd.f32 %v1759, %v1912
        %1918 = vrot.lane.b32.xlu0 %v794, 100
        %v1919 = vpop.permute.xlu0 %1918
        %1920 = vrot.lane.b32.xlu0 %v795, 100
        %v1921 = vpop.permute.xlu0 %1920
        %v1923 = vsel %vm801, %v1919, 0
        %v1926 = vsel %vm801, %v1921, 0
        %1928 = vmatprep.subr.bf16.mxu0 0
        %1929 = vmatpush1.bf16.xpose.msra.mxu0 %v1926
        %1930 = vmatprep.subr.bf16.mxu0 0
        %1931 = vmatpush1.bf16.xpose.msra.mxu0 0
        %1932 = vmatprep.subr.bf16.mxu0 0
        %1933 = vmatpush1.bf16.xpose.msra.mxu0 0
        %1934 = vmatprep.subr.bf16.mxu0 0
        %1935 = vmatpush1.bf16.xpose.msra.mxu0 0
        %1936 = vmatprep.subr.bf16.mxu0 0
        %1937 = vmatpush1.bf16.xpose.msra.mxu0 0
        %1938 = vmatprep.subr.bf16.mxu0 0
        %1939 = vmatpush1.bf16.xpose.msra.mxu0 0
        %1940 = vmatprep.subr.bf16.mxu0 0
        %1941 = vmatpush1.bf16.xpose.msra.mxu0 0
        %1942 = vmatprep.subr.bf16.mxu0 0
        %1943 = vmatpush1.bf16.xpose.msra.mxu0 0
        %1944 = vmatprep.subr.bf16.mxu0 0
        %1945 = vmatpush1.bf16.xpose.msra.mxu0 0
        %1946 = vmatprep.subr.bf16.mxu0 0
        %1947 = vmatpush1.bf16.xpose.msra.mxu0 0
        %1948 = vmatprep.subr.bf16.mxu0 0
        %1949 = vmatpush1.bf16.xpose.msra.mxu0 0
        %1950 = vmatprep.subr.bf16.mxu0 0
        %1951 = vmatpush1.bf16.xpose.msra.mxu0 0
        %1952 = vmatprep.subr.bf16.mxu0 0
        %1953 = vmatpush1.bf16.xpose.msra.mxu0 0
        %1954 = vmatprep.subr.bf16.mxu0 0
        %1955 = vmatpush1.bf16.xpose.msra.mxu0 0
        %1956 = vmatprep.subr.bf16.mxu0 0
        %1957 = vmatpush1.bf16.xpose.msra.mxu0 0
        %1958 = vmatprep.subr.bf16.mxu0 0
        %1959 = vmatpush1.bf16.xpose.msra.mxu0 0
        %1960 = vmatprep.mubr.bf16.mxu0 0
        %1961 = vmatmul.mubr.bf16.gmra.mrb[0].mxu0 %v1923
        %v1962 = vpop.f32.mrb[0].mxu0
        %v1963 = vadd.f32 0.0, %v1962
        %v1964 = vpop.f32.mrb[0].mxu0
        %v1965 = vpop.f32.mrb[0].mxu0
        %v1966 = vpop.f32.mrb[0].mxu0
        %1967 = vdwg.mxu0
        %v1968 = vsel %vm848, %v1963, -inf
        %1969 = vmax.xlane.f32.xlu0 %v1968
        %v1970 = vpop.xlane.xlu0 %1969
        %v1971 = vsub.f32 %v1963, %v1970
        %v1972 = vmul.f32 %v1971, 1.442695
        %v1973 = vpow.pop %v1972
        %v1974 = vsel %vm848, %v1973, 0.0
        %1975 = vadd.xlane.f32.xlu0 %v1974
        %v1976 = vpop.xlane.xlu0 %1975
        %v1977 = vrcp.pop %v1976
        %v1978 = vmul.f32 %v1973, %v1977
        %v1979 = vpack.c.bf16 %v1978, %v1978
        %1980 = vrot.lane.b32.xlu0 %v796, 100
        %v1981 = vpop.permute.xlu0 %1980
        %v1983 = vsel %vm848, %v1979, 0
        %v1986 = vsel %vm864, %v1981, 0
        %1988 = vmatprep.subr.bf16.mxu0 0
        %1989 = vmatpush1.bf16.msra.mxu0 %v1986
        %1990 = vmatprep.subr.bf16.mxu0 0
        %1991 = vmatpush1.bf16.msra.mxu0 0
        %1992 = vmatprep.subr.bf16.mxu0 0
        %1993 = vmatpush1.bf16.msra.mxu0 0
        %1994 = vmatprep.subr.bf16.mxu0 0
        %1995 = vmatpush1.bf16.msra.mxu0 0
        %1996 = vmatprep.subr.bf16.mxu0 0
        %1997 = vmatpush1.bf16.msra.mxu0 0
        %1998 = vmatprep.subr.bf16.mxu0 0
        %1999 = vmatpush1.bf16.msra.mxu0 0
        %2000 = vmatprep.subr.bf16.mxu0 0
        %2001 = vmatpush1.bf16.msra.mxu0 0
        %2002 = vmatprep.subr.bf16.mxu0 0
        %2003 = vmatpush1.bf16.msra.mxu0 0
        %2004 = vmatprep.subr.bf16.mxu0 0
        %2005 = vmatpush1.bf16.msra.mxu0 0
        %2006 = vmatprep.subr.bf16.mxu0 0
        %2007 = vmatpush1.bf16.msra.mxu0 0
        %2008 = vmatprep.subr.bf16.mxu0 0
        %2009 = vmatpush1.bf16.msra.mxu0 0
        %2010 = vmatprep.subr.bf16.mxu0 0
        %2011 = vmatpush1.bf16.msra.mxu0 0
        %2012 = vmatprep.subr.bf16.mxu0 0
        %2013 = vmatpush1.bf16.msra.mxu0 0
        %2014 = vmatprep.subr.bf16.mxu0 0
        %2015 = vmatpush1.bf16.msra.mxu0 0
        %2016 = vmatprep.subr.bf16.mxu0 0
        %2017 = vmatpush1.bf16.msra.mxu0 0
        %2018 = vmatprep.subr.bf16.mxu0 0
        %2019 = vmatpush1.bf16.msra.mxu0 0
        %2020 = vmatprep.mubr.bf16.mxu0 0
        %2021 = vmatmul.mubr.bf16.gmra.mrb[0].mxu0 %v1983
        %v2022 = vpop.f32.mrb[0].mxu0
        %v2023 = vadd.f32 0.0, %v2022
        %v2024 = vpop.f32.mrb[0].mxu0
        %v2025 = vpop.f32.mrb[0].mxu0
        %v2026 = vpop.f32.mrb[0].mxu0
        %2027 = vdwg.mxu0
        %v2028 = vpack.c.bf16 %v2023, %v2023
        %v2030 = vunpack.c.l.b16 %v800
        %v2031 = vpack.c.b16 %v2030, %v2030
        %v2032 = vrot.slane %v2031, 2
        %v2034 = vsel %vm801, %v2028, 0
        %v2037 = vsel %vm1030, %v2032, 0
        %2039 = vmatprep.subr.bf16.mxu0 0
        %2040 = vmatpush1.bf16.msra.mxu0 %v2037
        %2041 = vmatprep.subr.bf16.mxu0 0
        %2042 = vmatpush1.bf16.msra.mxu0 0
        %2043 = vmatprep.subr.bf16.mxu0 0
        %2044 = vmatpush1.bf16.msra.mxu0 0
        %2045 = vmatprep.subr.bf16.mxu0 0
        %2046 = vmatpush1.bf16.msra.mxu0 0
        %2047 = vmatprep.subr.bf16.mxu0 0
        %2048 = vmatpush1.bf16.msra.mxu0 0
        %2049 = vmatprep.subr.bf16.mxu0 0
        %2050 = vmatpush1.bf16.msra.mxu0 0
        %2051 = vmatprep.subr.bf16.mxu0 0
        %2052 = vmatpush1.bf16.msra.mxu0 0
        %2053 = vmatprep.subr.bf16.mxu0 0
        %2054 = vmatpush1.bf16.msra.mxu0 0
        %2055 = vmatprep.subr.bf16.mxu0 0
        %2056 = vmatpush1.bf16.msra.mxu0 0
        %2057 = vmatprep.subr.bf16.mxu0 0
        %2058 = vmatpush1.bf16.msra.mxu0 0
        %2059 = vmatprep.subr.bf16.mxu0 0
        %2060 = vmatpush1.bf16.msra.mxu0 0
        %2061 = vmatprep.subr.bf16.mxu0 0
        %2062 = vmatpush1.bf16.msra.mxu0 0
        %2063 = vmatprep.subr.bf16.mxu0 0
        %2064 = vmatpush1.bf16.msra.mxu0 0
        %2065 = vmatprep.subr.bf16.mxu0 0
        %2066 = vmatpush1.bf16.msra.mxu0 0
        %2067 = vmatprep.subr.bf16.mxu0 0
        %2068 = vmatpush1.bf16.msra.mxu0 0
        %2069 = vmatprep.subr.bf16.mxu0 0
        %2070 = vmatpush1.bf16.msra.mxu0 0
        %2071 = vmatprep.mubr.bf16.mxu0 0
        %2072 = vmatmul.mubr.bf16.gmra.mrb[0].mxu0 %v2034
        %v2073 = vpop.f32.mrb[0].mxu0
        %v2074 = vadd.f32 0.0, %v2073
        %v2075 = vpop.f32.mrb[0].mxu0
        %v2076 = vpop.f32.mrb[0].mxu0
        %v2077 = vpop.f32.mrb[0].mxu0
        %2078 = vdwg.mxu0
        %v2079 = vadd.f32 %v1917, %v2074
        %v2080 = vld [vmem:[%s10] sm:$0x1]
        %v2082 = vlaneseq
        %v2083 = vshrl.u32 %v2082, 7
        %v2084 = vsub.s32 0, %v2083
        %v2085 = vrot.slane %v2080, %v2084
        %v2087 = vadd.f32 %v2079, %v2085
        %v2088 = vpack.c.bf16 %v2087, %v2087
        %v2089 = vld [vmem:[#allocation13] sm:$0xf]
        %v2090 = vld [vmem:[#allocation13 + $0x4] sm:$0xf]
        %v2091 = vld [vmem:[#allocation13 + $0x8] sm:$0xf]
        %v2092 = vld [vmem:[#allocation13 + $0xc] sm:$0xf]
        %v2093 = vld [vmem:[%s12] sm:$0x1]
        %v2095 = vlaneseq
        %v2096 = vshrl.u32 %v2095, 7
        %v2097 = vsub.s32 0, %v2096
        %v2098 = vrot.slane %v2093, %v2097
        %v2104 = vunpack.c.l.b16 %v2089
        %v2105 = vunpack.c.l.b16 %v2090
        %v2106 = vunpack.c.l.b16 %v2091
        %v2107 = vunpack.c.l.b16 %v2092
        %v2108 = vpack.c.b16 %v2105, %v2104
        %v2109 = vpack.c.b16 %v2107, %v2106
        %v2113 = vsel %vm624, %v2088, 0
        %2115 = vmatprep.subr.bf16.mxu0 0
        %2116 = vmatpush1.bf16.msra.mxu0 %v2108
        %2117 = vmatprep.subr.bf16.mxu0 0
        %2118 = vmatpush1.bf16.msra.mxu0 %v2109
        %2119 = vmatprep.subr.bf16.mxu0 0
        %2120 = vmatpush1.bf16.msra.mxu0 0
        %2121 = vmatprep.subr.bf16.mxu0 0
        %2122 = vmatpush1.bf16.msra.mxu0 0
        %2123 = vmatprep.subr.bf16.mxu0 0
        %2124 = vmatpush1.bf16.msra.mxu0 0
        %2125 = vmatprep.subr.bf16.mxu0 0
        %2126 = vmatpush1.bf16.msra.mxu0 0
        %2127 = vmatprep.subr.bf16.mxu0 0
        %2128 = vmatpush1.bf16.msra.mxu0 0
        %2129 = vmatprep.subr.bf16.mxu0 0
        %2130 = vmatpush1.bf16.msra.mxu0 0
        %2131 = vmatprep.subr.bf16.mxu0 0
        %2132 = vmatpush1.bf16.msra.mxu0 0
        %2133 = vmatprep.subr.bf16.mxu0 0
        %2134 = vmatpush1.bf16.msra.mxu0 0
        %2135 = vmatprep.subr.bf16.mxu0 0
        %2136 = vmatpush1.bf16.msra.mxu0 0
        %2137 = vmatprep.subr.bf16.mxu0 0
        %2138 = vmatpush1.bf16.msra.mxu0 0
        %2139 = vmatprep.subr.bf16.mxu0 0
        %2140 = vmatpush1.bf16.msra.mxu0 0
        %2141 = vmatprep.subr.bf16.mxu0 0
        %2142 = vmatpush1.bf16.msra.mxu0 0
        %2143 = vmatprep.subr.bf16.mxu0 0
        %2144 = vmatpush1.bf16.msra.mxu0 0
        %2145 = vmatprep.subr.bf16.mxu0 0
        %2146 = vmatpush1.bf16.msra.mxu0 0
        %2147 = vmatprep.mubr.bf16.mxu0 0
        %2148 = vmatmul.mubr.bf16.gmra.mrb[0].mxu0 %v2113
        %v2149 = vpop.f32.mrb[0].mxu0
        %v2150 = vadd.f32 %v2098, %v2149
        %v2151 = vpop.f32.mrb[0].mxu0
        %v2152 = vpop.f32.mrb[0].mxu0
        %v2153 = vpop.f32.mrb[0].mxu0
        %2154 = vdwg.mxu0
        %2155 = vst.msk [vmem:[%s538] sm:$0xff] %vm624, %v2150
        %s2156 = sand.u32 %s319, 1
        %s2157 = scalar_lea.sflag [#allocation4], %s2156
        %s2158 = sand.u32 %s319, 1
        %s2159 = smul.addr %s2158, 8
        %s2160 = scalar_lea.vmem [#allocation14], %s2159
        // Predicated region
        $region101: #{tpu_custom_call.1} parent=71 // pred_check
          %p2161 = pneg %p329
        $region102: #{tpu_custom_call.1} parent=71 // pred_check_branch
          %2163 = sbr.rel (%p2161) target = $region104
        $region103: #{tpu_custom_call.1} parent=71 // pred_region
          %s2165 = ssub.s32 128, 128
          %2166 = vsyncadd %s2157, %s2165
          %s2167 = smul.addr %s33, 128
          %s2168 = scalar_lea.hbm %s13, %s2167
          %s2170 = sshll.u32 %s2160, 4
          %s2171 = int_to_ptr.vmem [resolvable:$true] %s2170
          %2173 = dma.vmem_to_hbm [thread:$0]  %s2171, 128, %s2168, %s2157
        $region104: #{tpu_custom_call.1} parent=71 // pred_fallthru
          _
      $region72: #{tpu_custom_call.1} parent=5 // pred_fallthru
        _
      %p2174 = scmp.le.s32.totalorder 2, %s28
      // Predicated region
      $region105: #{tpu_custom_call.1} parent=5 // pred_check
        %p2175 = pneg %p2174
      $region106: #{tpu_custom_call.1} parent=5 // pred_check_branch
        %2177 = sbr.rel (%p2175) target = $region108
      $region107: #{tpu_custom_call.1} parent=5 // pred_region
        %s2178 = ssub.s32 %s28, 2
        // Predicated region
        $region109: #{tpu_custom_call.1} parent=107 // pred_check
          %p2179 = pneg %p335
        $region110: #{tpu_custom_call.1} parent=107 // pred_check_branch
          %2181 = sbr.rel (%p2179) target = $region112
        $region111: #{tpu_custom_call.1} parent=107 // pred_region
          %s2182 = sand.u32 %s320, 1
          %s2183 = scalar_lea.sflag [#allocation4], %s2182
          %s2184 = sand.u32 %s320, 1
          %s2185 = smul.addr %s2184, 8
          %s2186 = scalar_lea.vmem [#allocation14], %s2185
          %2187 = dma.done %s2183, 128
        $region112: #{tpu_custom_call.1} parent=107 // pred_fallthru
          _
      $region108: #{tpu_custom_call.1} parent=5 // pred_fallthru
        _
    $region6: #{tpu_custom_call.1} parent=1 // loop_footer
      %s32 = sadd.s32 1, %s28
    $region7: #{tpu_custom_call.1} parent=1 // loop_footer_branch
      %27 = sbr.rel target = $region3
    $region8: #{tpu_custom_call.1} parent=1 // loop_exit
      _
    %2188 = vsyncpa [#allocation3], 1
    %s2189 = scalar_lea.sflag [#allocation3], 1
    %2190 = vsyncpa %s2189, 1
    %2191 = vsyncpa [#allocation6], 1
    %2192 = vsyncpa [#allocation9], 1
    %2193 = vsyncpa [#allocation12], 1
    %2194 = vsyncpa [#allocation4], 1
    %s2195 = scalar_lea.sflag [#allocation4], 1
    %2196 = vsyncpa %s2195, 1

</llo_original>
